<compile_context>
chip_gen: v6e
topology: v6e:2x2x1
jax: 0.10.0
libtpu: 0.0.40
codegen_flags: <defaults>
</compile_context>

<pallas_src>
import jax
import jax.numpy as jnp
from jax.experimental import pallas as pl
from jax.experimental.pallas import tpu as pltpu

_LANE = 128              # lane width: output stays lane-dense (unmasked vst)
_MAX_BLOCK_ROWS = 2048   # (2048,128) f32 = 1 MiB/buffer; 4 arrays x 2 bufs = 8 MiB
_MIN_KERNEL_ELEMS = 64 * 1024  # below this, plain jnp beats a kernel launch


def _reparam_kernel(mu_ref, logvar_ref, eps_ref, z_ref):
    """z = mu + exp(0.5*logvar) * eps  (one EUP transcendental per element)."""
    z_ref[...] = mu_ref[...] + jnp.exp(0.5 * logvar_ref[...]) * eps_ref[...]


def _pick_block_rows(rows):
    """Largest lane-dense block that respects the (8,128) rule.

    rows <= _MAX_BLOCK_ROWS: single block equal to the full extent (always
    legal).  Otherwise a 2048-row block (multiple of 8); Pallas masks the
    ragged final block if rows is not a multiple of it.
    """
    if rows <= _MAX_BLOCK_ROWS:
        return rows
    # TODO(synk): on v7x, cap lower when the resulting grid has < 2 steps per
    # TensorCore so both cores get work.
    return _MAX_BLOCK_ROWS


def sampling_gaussian(mu, logvar, key):
    """JAX/Pallas port of sampling_gaussian: returns (mu, logvar, z)."""
    assert mu.shape == logvar.shape
    orig_shape = mu.shape
    dtype = mu.dtype
    n = mu.size

    if n < _MIN_KERNEL_ELEMS:
        # Tiny latent: launch + DMA setup costs more than the math itself.
        eps = jax.random.normal(key, orig_shape, dtype=jnp.float32).astype(dtype)
        z = mu + jnp.exp(0.5 * logvar) * eps
        return mu, logvar, z

    n_rows = pl.cdiv(n, _LANE)
    padded = n_rows * _LANE

    if padded == n:
        # Free row-major reshape (bitcast) — no extra HBM traffic.
        mu2 = mu.reshape(n_rows, _LANE)
        lv2 = logvar.reshape(n_rows, _LANE)
    else:
        # TODO(synk): for non-128-multiple sizes this pad costs one extra HBM
        # round-trip of mu/logvar; a masked in-kernel tail store would avoid it.
        pad = padded - n
        mu2 = jnp.pad(mu.reshape(-1), (0, pad)).reshape(n_rows, _LANE)
        lv2 = jnp.pad(logvar.reshape(-1), (0, pad)).reshape(n_rows, _LANE)

    # eps generated directly at the lane-dense shape (<=127 wasted draws);
    # drawn in f32 then cast so bf16 models still get full-precision samples.
    eps2 = jax.random.normal(key, (n_rows, _LANE), dtype=jnp.float32).astype(dtype)

    block_rows = _pick_block_rows(n_rows)
    grid = (pl.cdiv(n_rows, block_rows),)
    spec = pl.BlockSpec((block_rows, _LANE), lambda i: (i, 0))

    z2 = pl.pallas_call(
        _reparam_kernel,
        out_shape=jax.ShapeDtypeStruct((n_rows, _LANE), dtype),
        grid=grid,
        in_specs=[spec, spec, spec],
        out_specs=spec,
        compiler_params=pltpu.CompilerParams(
            dimension_semantics=("parallel",)),
    )(mu2, lv2, eps2)

    if padded == n:
        z = z2.reshape(orig_shape)
    else:
        z = z2.reshape(-1)[:n].reshape(orig_shape)

    # mu / logvar are pure passthroughs: return the input arrays, no copies.
    return mu, logvar, z


class BaseVAE:
    """JAX/Pallas port of BaseVAE. Only _infer_latent has real compute."""

    def __init__(self, input_size, latent_dim, is_featExtract=False):
        self.input_size = input_size
        self.latent_dim = latent_dim
        self.is_featExtract = is_featExtract
        # BaseVAE.__init__ defines no trainable parameters.

    def infer_flat_size(self):
        raise NotImplementedError  # abstract in the PyTorch source

    def encode(self, x):
        raise NotImplementedError  # abstract in the PyTorch source

    def decode(self, z):
        raise NotImplementedError  # abstract in the PyTorch source

    def forward(self, x):
        raise NotImplementedError  # abstract in the PyTorch source

    def _infer_latent(self, mu, logvar, key=None):
        if self.is_featExtract:
            # "Infer mu as the feature vector": pure identity — no kernel
            # launch, no RNG, no HBM traffic.
            return mu, logvar, mu
        assert key is not None, "need a PRNG key for the sampling path"
        return sampling_gaussian(mu, logvar, key)


def _reference_z(mu, logvar, key):
    """Pure-jnp reference mirroring the eps draw used by sampling_gaussian."""
    n = mu.size
    if n < _MIN_KERNEL_ELEMS:
        eps = jax.random.normal(key, mu.shape, dtype=jnp.float32).astype(mu.dtype)
    else:
        n_rows = pl.cdiv(n, _LANE)
        eps = jax.random.normal(key, (n_rows, _LANE), dtype=jnp.float32)
        eps = eps.astype(mu.dtype).reshape(-1)[:n].reshape(mu.shape)
    return mu + jnp.exp(0.5 * logvar) * eps


if __name__ == "__main__":
    root = jax.random.PRNGKey(0)
    k_mu, k_lv, k_e1, k_e2, k_mu2, k_lv2, k_e3, k_mu3, k_lv3, k_e4, \
        k_mu4, k_lv4, k_e5 = jax.random.split(root, 13)

    vae = BaseVAE(input_size=(8, 32), latent_dim=32, is_featExtract=False)
    vae_feat = BaseVAE(input_size=(8, 32), latent_dim=32, is_featExtract=True)

    # --- tiny latent (8,32): fast jnp path (no kernel launch) ---
    mu_s = jax.random.normal(k_mu, (8, 32), dtype=jnp.float32)
    lv_s = 0.5 * jax.random.normal(k_lv, (8, 32), dtype=jnp.float32)
    mu_o, lv_o, z_s = vae._infer_latent(mu_s, lv_s, k_e1)
    jax.block_until_ready(z_s)
    assert mu_o is mu_s and lv_o is lv_s, "passthroughs must be the inputs"
    assert z_s.shape == mu_s.shape and bool(jnp.all(jnp.isfinite(z_s)))
    _, _, z_s_same = vae._infer_latent(mu_s, lv_s, k_e1)
    _, _, z_s_diff = vae._infer_latent(mu_s, lv_s, k_e2)
    jax.block_until_ready((z_s_same, z_s_diff))
    assert bool(jnp.allclose(z_s, z_s_same)), "same key must reproduce z"
    assert not bool(jnp.allclose(z_s, z_s_diff)), "different key must change z"

    # --- featExtract path: pure identity, no kernel ---
    mu_f, lv_f, z_f = vae_feat._infer_latent(mu_s, lv_s)
    assert z_f is mu_s and lv_f is lv_s, "featExtract must return inputs as-is"

    # --- (1024,160): 163840 elems, 128-multiple -> free reshape, 1-block kernel ---
    mu_a = jax.random.normal(k_mu2, (1024, 160), dtype=jnp.float32)
    lv_a = 0.25 * jax.random.normal(k_lv2, (1024, 160), dtype=jnp.float32)
    _, _, z_a = vae._infer_latent(mu_a, lv_a, k_e3)
    jax.block_until_ready(z_a)
    assert bool(jnp.all(jnp.isfinite(z_a)))
    ref_a = _reference_z(mu_a, lv_a, k_e3)
    assert bool(jnp.allclose(z_a, ref_a, rtol=1e-4, atol=1e-4)), "kernel != reference (aligned case)"
    eps_a = (z_a - mu_a) * jnp.exp(-0.5 * lv_a)
    ma, sa = float(eps_a.mean()), float(eps_a.std())
    assert abs(ma) < 0.02, f"eps mean off: {ma}"
    assert 0.97 < sa < 1.03, f"eps std off: {sa}"

    # --- (4096,128): multi-block grid (2 x 2048-row blocks) ---
    mu_b = jax.random.normal(k_mu3, (4096, 128), dtype=jnp.float32)
    lv_b = 0.25 * jax.random.normal(k_lv3, (4096, 128), dtype=jnp.float32)
    _, _, z_b = vae._infer_latent(mu_b, lv_b, k_e4)
    jax.block_until_ready(z_b)
    ref_b = _reference_z(mu_b, lv_b, k_e4)
    assert bool(jnp.allclose(z_b, ref_b, rtol=1e-4, atol=1e-4)), "kernel != reference (multi-block case)"
    _, _, z_b_same = vae._infer_latent(mu_b, lv_b, k_e4)
    jax.block_until_ready(z_b_same)
    assert bool(jnp.allclose(z_b, z_b_same)), "same key must reproduce z (kernel path)"

    # --- (1000,77): 77000 elems, NOT a 128-multiple -> minimal pad path ---
    mu_c = jax.random.normal(k_mu4, (1000, 77), dtype=jnp.float32)
    lv_c = 0.25 * jax.random.normal(k_lv4, (1000, 77), dtype=jnp.float32)
    _, _, z_c = vae._infer_latent(mu_c, lv_c, k_e5)
    jax.block_until_ready(z_c)
    assert z_c.shape == mu_c.shape and bool(jnp.all(jnp.isfinite(z_c)))
    ref_c = _reference_z(mu_c, lv_c, k_e5)
    assert bool(jnp.allclose(z_c, ref_c, rtol=1e-4, atol=1e-4)), "kernel != reference (padded case)"
    eps_c = (z_c - mu_c) * jnp.exp(-0.5 * lv_c)
    mc, sc = float(eps_c.mean()), float(eps_c.std())
    assert abs(mc) < 0.03, f"padded-case eps mean off: {mc}"
    assert 0.96 < sc < 1.04, f"padded-case eps std off: {sc}"

    print("KERNEL_OK")
</pallas_src>

<mosaic_0001>
module attributes {stable_mosaic.version = 11 : i64} {
  func.func @_reparam_kernel(%arg0: i32, %arg1: memref<1280x128xf32, #tpu.memory_space<vmem>>, %arg2: memref<1280x128xf32, #tpu.memory_space<vmem>>, %arg3: memref<1280x128xf32, #tpu.memory_space<vmem>>, %arg4: memref<1280x128xf32, #tpu.memory_space<vmem>>) attributes {dimension_semantics = [#tpu.dimension_semantics<parallel>], iteration_bounds = array<i64: 1>, scalar_prefetch = 0 : i64, scratch_operands = 0 : i64, tpu.core_type = #tpu.core_type<tc>, window_params = [{transform_indices = @transform_0, window_bounds = array<i64: 1280, 128>}, {transform_indices = @transform_1, window_bounds = array<i64: 1280, 128>}, {transform_indices = @transform_2, window_bounds = array<i64: 1280, 128>}, {transform_indices = @transform_3, window_bounds = array<i64: 1280, 128>}]} {
    %c0 = arith.constant 0 : index
    %c0_0 = arith.constant 0 : index
    %0 = vector.load %arg1[%c0, %c0_0] : memref<1280x128xf32, #tpu.memory_space<vmem>>, vector<1280x128xf32>
    %c0_1 = arith.constant 0 : index
    %c0_2 = arith.constant 0 : index
    %1 = vector.load %arg2[%c0_1, %c0_2] : memref<1280x128xf32, #tpu.memory_space<vmem>>, vector<1280x128xf32>
    %cst = arith.constant 5.000000e-01 : f32
    %2 = vector.broadcast %cst : f32 to vector<1280x128xf32>
    %3 = arith.mulf %2, %1 : vector<1280x128xf32>
    %4 = math.exp %3 : vector<1280x128xf32>
    %c0_3 = arith.constant 0 : index
    %c0_4 = arith.constant 0 : index
    %5 = vector.load %arg3[%c0_3, %c0_4] : memref<1280x128xf32, #tpu.memory_space<vmem>>, vector<1280x128xf32>
    %6 = arith.mulf %4, %5 : vector<1280x128xf32>
    %7 = arith.addf %0, %6 : vector<1280x128xf32>
    %c0_5 = arith.constant 0 : index
    %c0_6 = arith.constant 0 : index
    %8 = vector.load %arg4[%c0_5, %c0_6] : memref<1280x128xf32, #tpu.memory_space<vmem>>, vector<1280x128xf32>
    tpu.vector_store %arg4[%c0_5, %c0_6], %7 {strides = array<i32>} : memref<1280x128xf32, #tpu.memory_space<vmem>>, vector<1280x128xf32>,
    return
  }
  func.func @transform_0(%arg0: i32) -> (i32, i32) {
    %c0_i32 = arith.constant 0 : i32
    %c0_i32_0 = arith.constant 0 : i32
    return %arg0, %c0_i32 : i32, i32
  }
  func.func @transform_1(%arg0: i32) -> (i32, i32) {
    %c0_i32 = arith.constant 0 : i32
    %c0_i32_0 = arith.constant 0 : i32
    return %arg0, %c0_i32 : i32, i32
  }
  func.func @transform_2(%arg0: i32) -> (i32, i32) {
    %c0_i32 = arith.constant 0 : i32
    %c0_i32_0 = arith.constant 0 : i32
    return %arg0, %c0_i32 : i32, i32
  }
  func.func @transform_3(%arg0: i32) -> (i32, i32) {
    %c0_i32 = arith.constant 0 : i32
    %c0_i32_0 = arith.constant 0 : i32
    return %arg0, %c0_i32 : i32, i32
  }
}

</mosaic_0001>

<llo_original>
// kernel: tpu_custom_call.1
$region0: #{tpu_custom_call.1}
  #allocation0 [shape = 'u32[]', space=smem, size = 0x4, offset = 0x4, fixed_abs, tag = 'smem constant byte address 0x4 - core index']
  #allocation1 [shape = 'u32[144,128]{1,0:T(1,128)}', space=vmem, size = 0x12000, scoped, tag = 'internal scratch']
  %s0 = inlined_call_operand.hbm [shape: f32[1280,128], index: 0, kind: input, shape index: {}]
  %s1 = inlined_call_operand.hbm [shape: f32[1280,128], index: 1, kind: input, shape index: {}]
  %s2 = inlined_call_operand.hbm [shape: f32[1280,128], index: 2, kind: input, shape index: {}]
  %s3 = inlined_call_operand.hbm [shape: f32[1280,128], index: 3, kind: output, shape index: {}]
  %s4 = sld [smem:[#allocation0]]
  $region34: #{tpu_custom_call.1} parent=0
    _
  %s6 = ssub.s32 1, %s4
  %s7 = scalar_select 0, %s6, %s4
  $region1: #{tpu_custom_call.1} parent=0
    #allocation2 [shape = 'u8[655360]{0}', space=vmem, size = 0xa0000, scoped, tag = 'input window, operand 0, single buffered']
    #allocation3 [shape = 's32[1]{0}', space=sflag, size = 0x4, scoped, tag = 'scoped memory for tpu_custom_call.1']
    #allocation4 [shape = 's32[1]{0}', space=sflag, size = 0x4, scoped, tag = 'scoped memory for tpu_custom_call.1']
    #allocation5 [shape = 'u8[655360]{0}', space=vmem, size = 0xa0000, scoped, tag = 'input window, operand 1, single buffered']
    #allocation6 [shape = 's32[1]{0}', space=sflag, size = 0x4, scoped, tag = 'scoped memory for tpu_custom_call.1']
    #allocation7 [shape = 'u8[655360]{0}', space=vmem, size = 0xa0000, scoped, tag = 'input window, operand 2, single buffered']
    #allocation8 [shape = 'u8[655360]{0}', space=vmem, size = 0xa0000, scoped, tag = 'output window, operand 0, single buffered']
    %8 = vsyncpa [#allocation3], 0
    %9 = vsyncpa [#allocation6], 0
    %10 = vsyncpa [#allocation4], 0
    // Predicated region
    $region2: #{tpu_custom_call.1} parent=1 // pred_check
      _
    $region3: #{tpu_custom_call.1} parent=1 // pred_check_branch
      %12 = sbr.rel (0) target = $region5
    $region4: #{tpu_custom_call.1} parent=1 // pred_region
      %s14 = ssub.s32 20480, 20480
      %15 = vsyncadd [#allocation3], %s14
      %s16 = sshll.u32 [#allocation2], 4
      %s17 = int_to_ptr.vmem [resolvable:$true] %s16
      %22 = dma.hbm_to_vmem [thread:$0]  %s0, 20480, %s17, [#allocation3], 128, 128, 8
    $region5: #{tpu_custom_call.1} parent=1 // pred_fallthru
      _
    // Predicated region
    $region6: #{tpu_custom_call.1} parent=1 // pred_check
      _
    $region7: #{tpu_custom_call.1} parent=1 // pred_check_branch
      %24 = sbr.rel (0) target = $region9
    $region8: #{tpu_custom_call.1} parent=1 // pred_region
      %s26 = ssub.s32 20480, 20480
      %27 = vsyncadd [#allocation6], %s26
      %s28 = sshll.u32 [#allocation5], 4
      %s29 = int_to_ptr.vmem [resolvable:$true] %s28
      %34 = dma.hbm_to_vmem [thread:$0]  %s1, 20480, %s29, [#allocation6], 128, 128, 8
    $region9: #{tpu_custom_call.1} parent=1 // pred_fallthru
      _
    // Predicated region
    $region10: #{tpu_custom_call.1} parent=1 // pred_check
      _
    $region11: #{tpu_custom_call.1} parent=1 // pred_check_branch
      %36 = sbr.rel (0) target = $region13
    $region12: #{tpu_custom_call.1} parent=1 // pred_region
      %s38 = ssub.s32 20480, 20480
      %39 = vsyncadd [#allocation6], %s38
      %s40 = sshll.u32 [#allocation7], 4
      %s41 = int_to_ptr.vmem [resolvable:$true] %s40
      %46 = dma.hbm_to_vmem [thread:$0]  %s2, 20480, %s41, [#allocation6], 128, 128, 8
    $region13: #{tpu_custom_call.1} parent=1 // pred_fallthru
      _
    // Predicated region
    $region14: #{tpu_custom_call.1} parent=1 // pred_check
      _
    $region15: #{tpu_custom_call.1} parent=1 // pred_check_branch
      %48 = sbr.rel (0) target = $region17
    $region16: #{tpu_custom_call.1} parent=1 // pred_region
      %49 = dma.done [#allocation3], 20480
    $region17: #{tpu_custom_call.1} parent=1 // pred_fallthru
      _
    // Predicated region
    $region18: #{tpu_custom_call.1} parent=1 // pred_check
      _
    $region19: #{tpu_custom_call.1} parent=1 // pred_check_branch
      %51 = sbr.rel (0) target = $region21
    $region20: #{tpu_custom_call.1} parent=1 // pred_region
      %52 = dma.done [#allocation6], 20480
    $region21: #{tpu_custom_call.1} parent=1 // pred_fallthru
      _
    // Predicated region
    $region22: #{tpu_custom_call.1} parent=1 // pred_check
      _
    $region23: #{tpu_custom_call.1} parent=1 // pred_check_branch
      %54 = sbr.rel (0) target = $region25
    $region24: #{tpu_custom_call.1} parent=1 // pred_region
      %55 = dma.done [#allocation6], 20480
    $region25: #{tpu_custom_call.1} parent=1 // pred_fallthru
      _
    %v56 = vld [vmem:[#allocation2] sm:$0xff]
    %v57 = vld [vmem:[#allocation2 + $0x8] sm:$0xff]
    %v58 = vld [vmem:[#allocation2 + $0x10] sm:$0xff]
    %v59 = vld [vmem:[#allocation2 + $0x18] sm:$0xff]
    %v60 = vld [vmem:[#allocation2 + $0x20] sm:$0xff]
    %v61 = vld [vmem:[#allocation2 + $0x28] sm:$0xff]
    %v62 = vld [vmem:[#allocation2 + $0x30] sm:$0xff]
    %v63 = vld [vmem:[#allocation2 + $0x38] sm:$0xff]
    %v64 = vld [vmem:[#allocation2 + $0x40] sm:$0xff]
    %v65 = vld [vmem:[#allocation2 + $0x48] sm:$0xff]
    %v66 = vld [vmem:[#allocation2 + $0x50] sm:$0xff]
    %v67 = vld [vmem:[#allocation2 + $0x58] sm:$0xff]
    %v68 = vld [vmem:[#allocation2 + $0x60] sm:$0xff]
    %v69 = vld [vmem:[#allocation2 + $0x68] sm:$0xff]
    %v70 = vld [vmem:[#allocation2 + $0x70] sm:$0xff]
    %v71 = vld [vmem:[#allocation2 + $0x78] sm:$0xff]
    %v72 = vld [vmem:[#allocation2 + $0x80] sm:$0xff]
    %v73 = vld [vmem:[#allocation2 + $0x88] sm:$0xff]
    %v74 = vld [vmem:[#allocation2 + $0x90] sm:$0xff]
    %v75 = vld [vmem:[#allocation2 + $0x98] sm:$0xff]
    %v76 = vld [vmem:[#allocation2 + $0xa0] sm:$0xff]
    %v77 = vld [vmem:[#allocation2 + $0xa8] sm:$0xff]
    %v78 = vld [vmem:[#allocation2 + $0xb0] sm:$0xff]
    %v79 = vld [vmem:[#allocation2 + $0xb8] sm:$0xff]
    %v80 = vld [vmem:[#allocation2 + $0xc0] sm:$0xff]
    %v81 = vld [vmem:[#allocation2 + $0xc8] sm:$0xff]
    %v82 = vld [vmem:[#allocation2 + $0xd0] sm:$0xff]
    %v83 = vld [vmem:[#allocation2 + $0xd8] sm:$0xff]
    %v84 = vld [vmem:[#allocation2 + $0xe0] sm:$0xff]
    %v85 = vld [vmem:[#allocation2 + $0xe8] sm:$0xff]
    %v86 = vld [vmem:[#allocation2 + $0xf0] sm:$0xff]
    %v87 = vld [vmem:[#allocation2 + $0xf8] sm:$0xff]
    %v88 = vld [vmem:[#allocation2 + $0x100] sm:$0xff]
    %v89 = vld [vmem:[#allocation2 + $0x108] sm:$0xff]
    %v90 = vld [vmem:[#allocation2 + $0x110] sm:$0xff]
    %v91 = vld [vmem:[#allocation2 + $0x118] sm:$0xff]
    %v92 = vld [vmem:[#allocation2 + $0x120] sm:$0xff]
    %v93 = vld [vmem:[#allocation2 + $0x128] sm:$0xff]
    %v94 = vld [vmem:[#allocation2 + $0x130] sm:$0xff]
    %v95 = vld [vmem:[#allocation2 + $0x138] sm:$0xff]
    %v96 = vld [vmem:[#allocation2 + $0x140] sm:$0xff]
    %v97 = vld [vmem:[#allocation2 + $0x148] sm:$0xff]
    %v98 = vld [vmem:[#allocation2 + $0x150] sm:$0xff]
    %v99 = vld [vmem:[#allocation2 + $0x158] sm:$0xff]
    %v100 = vld [vmem:[#allocation2 + $0x160] sm:$0xff]
    %v101 = vld [vmem:[#allocation2 + $0x168] sm:$0xff]
    %v102 = vld [vmem:[#allocation2 + $0x170] sm:$0xff]
    %v103 = vld [vmem:[#allocation2 + $0x178] sm:$0xff]
    %v104 = vld [vmem:[#allocation2 + $0x180] sm:$0xff]
    %v105 = vld [vmem:[#allocation2 + $0x188] sm:$0xff]
    %v106 = vld [vmem:[#allocation2 + $0x190] sm:$0xff]
    %v107 = vld [vmem:[#allocation2 + $0x198] sm:$0xff]
    %v108 = vld [vmem:[#allocation2 + $0x1a0] sm:$0xff]
    %v109 = vld [vmem:[#allocation2 + $0x1a8] sm:$0xff]
    %v110 = vld [vmem:[#allocation2 + $0x1b0] sm:$0xff]
    %v111 = vld [vmem:[#allocation2 + $0x1b8] sm:$0xff]
    %v112 = vld [vmem:[#allocation2 + $0x1c0] sm:$0xff]
    %v113 = vld [vmem:[#allocation2 + $0x1c8] sm:$0xff]
    %v114 = vld [vmem:[#allocation2 + $0x1d0] sm:$0xff]
    %v115 = vld [vmem:[#allocation2 + $0x1d8] sm:$0xff]
    %v116 = vld [vmem:[#allocation2 + $0x1e0] sm:$0xff]
    %v117 = vld [vmem:[#allocation2 + $0x1e8] sm:$0xff]
    %v118 = vld [vmem:[#allocation2 + $0x1f0] sm:$0xff]
    %v119 = vld [vmem:[#allocation2 + $0x1f8] sm:$0xff]
    %v120 = vld [vmem:[#allocation2 + $0x200] sm:$0xff]
    %v121 = vld [vmem:[#allocation2 + $0x208] sm:$0xff]
    %v122 = vld [vmem:[#allocation2 + $0x210] sm:$0xff]
    %v123 = vld [vmem:[#allocation2 + $0x218] sm:$0xff]
    %v124 = vld [vmem:[#allocation2 + $0x220] sm:$0xff]
    %v125 = vld [vmem:[#allocation2 + $0x228] sm:$0xff]
    %v126 = vld [vmem:[#allocation2 + $0x230] sm:$0xff]
    %v127 = vld [vmem:[#allocation2 + $0x238] sm:$0xff]
    %v128 = vld [vmem:[#allocation2 + $0x240] sm:$0xff]
    %v129 = vld [vmem:[#allocation2 + $0x248] sm:$0xff]
    %v130 = vld [vmem:[#allocation2 + $0x250] sm:$0xff]
    %v131 = vld [vmem:[#allocation2 + $0x258] sm:$0xff]
    %v132 = vld [vmem:[#allocation2 + $0x260] sm:$0xff]
    %v133 = vld [vmem:[#allocation2 + $0x268] sm:$0xff]
    %v134 = vld [vmem:[#allocation2 + $0x270] sm:$0xff]
    %v135 = vld [vmem:[#allocation2 + $0x278] sm:$0xff]
    %v136 = vld [vmem:[#allocation2 + $0x280] sm:$0xff]
    %v137 = vld [vmem:[#allocation2 + $0x288] sm:$0xff]
    %v138 = vld [vmem:[#allocation2 + $0x290] sm:$0xff]
    %v139 = vld [vmem:[#allocation2 + $0x298] sm:$0xff]
    %v140 = vld [vmem:[#allocation2 + $0x2a0] sm:$0xff]
    %v141 = vld [vmem:[#allocation2 + $0x2a8] sm:$0xff]
    %v142 = vld [vmem:[#allocation2 + $0x2b0] sm:$0xff]
    %v143 = vld [vmem:[#allocation2 + $0x2b8] sm:$0xff]
    %v144 = vld [vmem:[#allocation2 + $0x2c0] sm:$0xff]
    %v145 = vld [vmem:[#allocation2 + $0x2c8] sm:$0xff]
    %v146 = vld [vmem:[#allocation2 + $0x2d0] sm:$0xff]
    %v147 = vld [vmem:[#allocation2 + $0x2d8] sm:$0xff]
    %v148 = vld [vmem:[#allocation2 + $0x2e0] sm:$0xff]
    %v149 = vld [vmem:[#allocation2 + $0x2e8] sm:$0xff]
    %v150 = vld [vmem:[#allocation2 + $0x2f0] sm:$0xff]
    %v151 = vld [vmem:[#allocation2 + $0x2f8] sm:$0xff]
    %v152 = vld [vmem:[#allocation2 + $0x300] sm:$0xff]
    %v153 = vld [vmem:[#allocation2 + $0x308] sm:$0xff]
    %v154 = vld [vmem:[#allocation2 + $0x310] sm:$0xff]
    %v155 = vld [vmem:[#allocation2 + $0x318] sm:$0xff]
    %v156 = vld [vmem:[#allocation2 + $0x320] sm:$0xff]
    %v157 = vld [vmem:[#allocation2 + $0x328] sm:$0xff]
    %v158 = vld [vmem:[#allocation2 + $0x330] sm:$0xff]
    %v159 = vld [vmem:[#allocation2 + $0x338] sm:$0xff]
    %v160 = vld [vmem:[#allocation2 + $0x340] sm:$0xff]
    %v161 = vld [vmem:[#allocation2 + $0x348] sm:$0xff]
    %v162 = vld [vmem:[#allocation2 + $0x350] sm:$0xff]
    %v163 = vld [vmem:[#allocation2 + $0x358] sm:$0xff]
    %v164 = vld [vmem:[#allocation2 + $0x360] sm:$0xff]
    %v165 = vld [vmem:[#allocation2 + $0x368] sm:$0xff]
    %v166 = vld [vmem:[#allocation2 + $0x370] sm:$0xff]
    %v167 = vld [vmem:[#allocation2 + $0x378] sm:$0xff]
    %v168 = vld [vmem:[#allocation2 + $0x380] sm:$0xff]
    %v169 = vld [vmem:[#allocation2 + $0x388] sm:$0xff]
    %v170 = vld [vmem:[#allocation2 + $0x390] sm:$0xff]
    %v171 = vld [vmem:[#allocation2 + $0x398] sm:$0xff]
    %v172 = vld [vmem:[#allocation2 + $0x3a0] sm:$0xff]
    %v173 = vld [vmem:[#allocation2 + $0x3a8] sm:$0xff]
    %v174 = vld [vmem:[#allocation2 + $0x3b0] sm:$0xff]
    %v175 = vld [vmem:[#allocation2 + $0x3b8] sm:$0xff]
    %v176 = vld [vmem:[#allocation2 + $0x3c0] sm:$0xff]
    %v177 = vld [vmem:[#allocation2 + $0x3c8] sm:$0xff]
    %v178 = vld [vmem:[#allocation2 + $0x3d0] sm:$0xff]
    %v179 = vld [vmem:[#allocation2 + $0x3d8] sm:$0xff]
    %v180 = vld [vmem:[#allocation2 + $0x3e0] sm:$0xff]
    %v181 = vld [vmem:[#allocation2 + $0x3e8] sm:$0xff]
    %v182 = vld [vmem:[#allocation2 + $0x3f0] sm:$0xff]
    %v183 = vld [vmem:[#allocation2 + $0x3f8] sm:$0xff]
    %v184 = vld [vmem:[#allocation2 + $0x400] sm:$0xff]
    %v185 = vld [vmem:[#allocation2 + $0x408] sm:$0xff]
    %v186 = vld [vmem:[#allocation2 + $0x410] sm:$0xff]
    %v187 = vld [vmem:[#allocation2 + $0x418] sm:$0xff]
    %v188 = vld [vmem:[#allocation2 + $0x420] sm:$0xff]
    %v189 = vld [vmem:[#allocation2 + $0x428] sm:$0xff]
    %v190 = vld [vmem:[#allocation2 + $0x430] sm:$0xff]
    %v191 = vld [vmem:[#allocation2 + $0x438] sm:$0xff]
    %v192 = vld [vmem:[#allocation2 + $0x440] sm:$0xff]
    %v193 = vld [vmem:[#allocation2 + $0x448] sm:$0xff]
    %v194 = vld [vmem:[#allocation2 + $0x450] sm:$0xff]
    %v195 = vld [vmem:[#allocation2 + $0x458] sm:$0xff]
    %v196 = vld [vmem:[#allocation2 + $0x460] sm:$0xff]
    %v197 = vld [vmem:[#allocation2 + $0x468] sm:$0xff]
    %v198 = vld [vmem:[#allocation2 + $0x470] sm:$0xff]
    %v199 = vld [vmem:[#allocation2 + $0x478] sm:$0xff]
    %v200 = vld [vmem:[#allocation2 + $0x480] sm:$0xff]
    %v201 = vld [vmem:[#allocation2 + $0x488] sm:$0xff]
    %v202 = vld [vmem:[#allocation2 + $0x490] sm:$0xff]
    %v203 = vld [vmem:[#allocation2 + $0x498] sm:$0xff]
    %v204 = vld [vmem:[#allocation2 + $0x4a0] sm:$0xff]
    %v205 = vld [vmem:[#allocation2 + $0x4a8] sm:$0xff]
    %v206 = vld [vmem:[#allocation2 + $0x4b0] sm:$0xff]
    %v207 = vld [vmem:[#allocation2 + $0x4b8] sm:$0xff]
    %v208 = vld [vmem:[#allocation2 + $0x4c0] sm:$0xff]
    %v209 = vld [vmem:[#allocation2 + $0x4c8] sm:$0xff]
    %v210 = vld [vmem:[#allocation2 + $0x4d0] sm:$0xff]
    %v211 = vld [vmem:[#allocation2 + $0x4d8] sm:$0xff]
    %v212 = vld [vmem:[#allocation2 + $0x4e0] sm:$0xff]
    %v213 = vld [vmem:[#allocation2 + $0x4e8] sm:$0xff]
    %v214 = vld [vmem:[#allocation2 + $0x4f0] sm:$0xff]
    %v215 = vld [vmem:[#allocation2 + $0x4f8] sm:$0xff]
    %v216 = vld [vmem:[#allocation5] sm:$0xff]
    %v217 = vld [vmem:[#allocation5 + $0x8] sm:$0xff]
    %v218 = vld [vmem:[#allocation5 + $0x10] sm:$0xff]
    %v219 = vld [vmem:[#allocation5 + $0x18] sm:$0xff]
    %v220 = vld [vmem:[#allocation5 + $0x20] sm:$0xff]
    %v221 = vld [vmem:[#allocation5 + $0x28] sm:$0xff]
    %v222 = vld [vmem:[#allocation5 + $0x30] sm:$0xff]
    %v223 = vld [vmem:[#allocation5 + $0x38] sm:$0xff]
    %v224 = vld [vmem:[#allocation5 + $0x40] sm:$0xff]
    %v225 = vld [vmem:[#allocation5 + $0x48] sm:$0xff]
    %v226 = vld [vmem:[#allocation5 + $0x50] sm:$0xff]
    %v227 = vld [vmem:[#allocation5 + $0x58] sm:$0xff]
    %v228 = vld [vmem:[#allocation5 + $0x60] sm:$0xff]
    %v229 = vld [vmem:[#allocation5 + $0x68] sm:$0xff]
    %v230 = vld [vmem:[#allocation5 + $0x70] sm:$0xff]
    %v231 = vld [vmem:[#allocation5 + $0x78] sm:$0xff]
    %v232 = vld [vmem:[#allocation5 + $0x80] sm:$0xff]
    %v233 = vld [vmem:[#allocation5 + $0x88] sm:$0xff]
    %v234 = vld [vmem:[#allocation5 + $0x90] sm:$0xff]
    %v235 = vld [vmem:[#allocation5 + $0x98] sm:$0xff]
    %v236 = vld [vmem:[#allocation5 + $0xa0] sm:$0xff]
    %v237 = vld [vmem:[#allocation5 + $0xa8] sm:$0xff]
    %v238 = vld [vmem:[#allocation5 + $0xb0] sm:$0xff]
    %v239 = vld [vmem:[#allocation5 + $0xb8] sm:$0xff]
    %v240 = vld [vmem:[#allocation5 + $0xc0] sm:$0xff]
    %v241 = vld [vmem:[#allocation5 + $0xc8] sm:$0xff]
    %v242 = vld [vmem:[#allocation5 + $0xd0] sm:$0xff]
    %v243 = vld [vmem:[#allocation5 + $0xd8] sm:$0xff]
    %v244 = vld [vmem:[#allocation5 + $0xe0] sm:$0xff]
    %v245 = vld [vmem:[#allocation5 + $0xe8] sm:$0xff]
    %v246 = vld [vmem:[#allocation5 + $0xf0] sm:$0xff]
    %v247 = vld [vmem:[#allocation5 + $0xf8] sm:$0xff]
    %v248 = vld [vmem:[#allocation5 + $0x100] sm:$0xff]
    %v249 = vld [vmem:[#allocation5 + $0x108] sm:$0xff]
    %v250 = vld [vmem:[#allocation5 + $0x110] sm:$0xff]
    %v251 = vld [vmem:[#allocation5 + $0x118] sm:$0xff]
    %v252 = vld [vmem:[#allocation5 + $0x120] sm:$0xff]
    %v253 = vld [vmem:[#allocation5 + $0x128] sm:$0xff]
    %v254 = vld [vmem:[#allocation5 + $0x130] sm:$0xff]
    %v255 = vld [vmem:[#allocation5 + $0x138] sm:$0xff]
    %v256 = vld [vmem:[#allocation5 + $0x140] sm:$0xff]
    %v257 = vld [vmem:[#allocation5 + $0x148] sm:$0xff]
    %v258 = vld [vmem:[#allocation5 + $0x150] sm:$0xff]
    %v259 = vld [vmem:[#allocation5 + $0x158] sm:$0xff]
    %v260 = vld [vmem:[#allocation5 + $0x160] sm:$0xff]
    %v261 = vld [vmem:[#allocation5 + $0x168] sm:$0xff]
    %v262 = vld [vmem:[#allocation5 + $0x170] sm:$0xff]
    %v263 = vld [vmem:[#allocation5 + $0x178] sm:$0xff]
    %v264 = vld [vmem:[#allocation5 + $0x180] sm:$0xff]
    %v265 = vld [vmem:[#allocation5 + $0x188] sm:$0xff]
    %v266 = vld [vmem:[#allocation5 + $0x190] sm:$0xff]
    %v267 = vld [vmem:[#allocation5 + $0x198] sm:$0xff]
    %v268 = vld [vmem:[#allocation5 + $0x1a0] sm:$0xff]
    %v269 = vld [vmem:[#allocation5 + $0x1a8] sm:$0xff]
    %v270 = vld [vmem:[#allocation5 + $0x1b0] sm:$0xff]
    %v271 = vld [vmem:[#allocation5 + $0x1b8] sm:$0xff]
    %v272 = vld [vmem:[#allocation5 + $0x1c0] sm:$0xff]
    %v273 = vld [vmem:[#allocation5 + $0x1c8] sm:$0xff]
    %v274 = vld [vmem:[#allocation5 + $0x1d0] sm:$0xff]
    %v275 = vld [vmem:[#allocation5 + $0x1d8] sm:$0xff]
    %v276 = vld [vmem:[#allocation5 + $0x1e0] sm:$0xff]
    %v277 = vld [vmem:[#allocation5 + $0x1e8] sm:$0xff]
    %v278 = vld [vmem:[#allocation5 + $0x1f0] sm:$0xff]
    %v279 = vld [vmem:[#allocation5 + $0x1f8] sm:$0xff]
    %v280 = vld [vmem:[#allocation5 + $0x200] sm:$0xff]
    %v281 = vld [vmem:[#allocation5 + $0x208] sm:$0xff]
    %v282 = vld [vmem:[#allocation5 + $0x210] sm:$0xff]
    %v283 = vld [vmem:[#allocation5 + $0x218] sm:$0xff]
    %v284 = vld [vmem:[#allocation5 + $0x220] sm:$0xff]
    %v285 = vld [vmem:[#allocation5 + $0x228] sm:$0xff]
    %v286 = vld [vmem:[#allocation5 + $0x230] sm:$0xff]
    %v287 = vld [vmem:[#allocation5 + $0x238] sm:$0xff]
    %v288 = vld [vmem:[#allocation5 + $0x240] sm:$0xff]
    %v289 = vld [vmem:[#allocation5 + $0x248] sm:$0xff]
    %v290 = vld [vmem:[#allocation5 + $0x250] sm:$0xff]
    %v291 = vld [vmem:[#allocation5 + $0x258] sm:$0xff]
    %v292 = vld [vmem:[#allocation5 + $0x260] sm:$0xff]
    %v293 = vld [vmem:[#allocation5 + $0x268] sm:$0xff]
    %v294 = vld [vmem:[#allocation5 + $0x270] sm:$0xff]
    %v295 = vld [vmem:[#allocation5 + $0x278] sm:$0xff]
    %v296 = vld [vmem:[#allocation5 + $0x280] sm:$0xff]
    %v297 = vld [vmem:[#allocation5 + $0x288] sm:$0xff]
    %v298 = vld [vmem:[#allocation5 + $0x290] sm:$0xff]
    %v299 = vld [vmem:[#allocation5 + $0x298] sm:$0xff]
    %v300 = vld [vmem:[#allocation5 + $0x2a0] sm:$0xff]
    %v301 = vld [vmem:[#allocation5 + $0x2a8] sm:$0xff]
    %v302 = vld [vmem:[#allocation5 + $0x2b0] sm:$0xff]
    %v303 = vld [vmem:[#allocation5 + $0x2b8] sm:$0xff]
    %v304 = vld [vmem:[#allocation5 + $0x2c0] sm:$0xff]
    %v305 = vld [vmem:[#allocation5 + $0x2c8] sm:$0xff]
    %v306 = vld [vmem:[#allocation5 + $0x2d0] sm:$0xff]
    %v307 = vld [vmem:[#allocation5 + $0x2d8] sm:$0xff]
    %v308 = vld [vmem:[#allocation5 + $0x2e0] sm:$0xff]
    %v309 = vld [vmem:[#allocation5 + $0x2e8] sm:$0xff]
    %v310 = vld [vmem:[#allocation5 + $0x2f0] sm:$0xff]
    %v311 = vld [vmem:[#allocation5 + $0x2f8] sm:$0xff]
    %v312 = vld [vmem:[#allocation5 + $0x300] sm:$0xff]
    %v313 = vld [vmem:[#allocation5 + $0x308] sm:$0xff]
    %v314 = vld [vmem:[#allocation5 + $0x310] sm:$0xff]
    %v315 = vld [vmem:[#allocation5 + $0x318] sm:$0xff]
    %v316 = vld [vmem:[#allocation5 + $0x320] sm:$0xff]
    %v317 = vld [vmem:[#allocation5 + $0x328] sm:$0xff]
    %v318 = vld [vmem:[#allocation5 + $0x330] sm:$0xff]
    %v319 = vld [vmem:[#allocation5 + $0x338] sm:$0xff]
    %v320 = vld [vmem:[#allocation5 + $0x340] sm:$0xff]
    %v321 = vld [vmem:[#allocation5 + $0x348] sm:$0xff]
    %v322 = vld [vmem:[#allocation5 + $0x350] sm:$0xff]
    %v323 = vld [vmem:[#allocation5 + $0x358] sm:$0xff]
    %v324 = vld [vmem:[#allocation5 + $0x360] sm:$0xff]
    %v325 = vld [vmem:[#allocation5 + $0x368] sm:$0xff]
    %v326 = vld [vmem:[#allocation5 + $0x370] sm:$0xff]
    %v327 = vld [vmem:[#allocation5 + $0x378] sm:$0xff]
    %v328 = vld [vmem:[#allocation5 + $0x380] sm:$0xff]
    %v329 = vld [vmem:[#allocation5 + $0x388] sm:$0xff]
    %v330 = vld [vmem:[#allocation5 + $0x390] sm:$0xff]
    %v331 = vld [vmem:[#allocation5 + $0x398] sm:$0xff]
    %v332 = vld [vmem:[#allocation5 + $0x3a0] sm:$0xff]
    %v333 = vld [vmem:[#allocation5 + $0x3a8] sm:$0xff]
    %v334 = vld [vmem:[#allocation5 + $0x3b0] sm:$0xff]
    %v335 = vld [vmem:[#allocation5 + $0x3b8] sm:$0xff]
    %v336 = vld [vmem:[#allocation5 + $0x3c0] sm:$0xff]
    %v337 = vld [vmem:[#allocation5 + $0x3c8] sm:$0xff]
    %v338 = vld [vmem:[#allocation5 + $0x3d0] sm:$0xff]
    %v339 = vld [vmem:[#allocation5 + $0x3d8] sm:$0xff]
    %v340 = vld [vmem:[#allocation5 + $0x3e0] sm:$0xff]
    %v341 = vld [vmem:[#allocation5 + $0x3e8] sm:$0xff]
    %v342 = vld [vmem:[#allocation5 + $0x3f0] sm:$0xff]
    %v343 = vld [vmem:[#allocation5 + $0x3f8] sm:$0xff]
    %v344 = vld [vmem:[#allocation5 + $0x400] sm:$0xff]
    %v345 = vld [vmem:[#allocation5 + $0x408] sm:$0xff]
    %v346 = vld [vmem:[#allocation5 + $0x410] sm:$0xff]
    %v347 = vld [vmem:[#allocation5 + $0x418] sm:$0xff]
    %v348 = vld [vmem:[#allocation5 + $0x420] sm:$0xff]
    %v349 = vld [vmem:[#allocation5 + $0x428] sm:$0xff]
    %v350 = vld [vmem:[#allocation5 + $0x430] sm:$0xff]
    %v351 = vld [vmem:[#allocation5 + $0x438] sm:$0xff]
    %v352 = vld [vmem:[#allocation5 + $0x440] sm:$0xff]
    %v353 = vld [vmem:[#allocation5 + $0x448] sm:$0xff]
    %v354 = vld [vmem:[#allocation5 + $0x450] sm:$0xff]
    %v355 = vld [vmem:[#allocation5 + $0x458] sm:$0xff]
    %v356 = vld [vmem:[#allocation5 + $0x460] sm:$0xff]
    %v357 = vld [vmem:[#allocation5 + $0x468] sm:$0xff]
    %v358 = vld [vmem:[#allocation5 + $0x470] sm:$0xff]
    %v359 = vld [vmem:[#allocation5 + $0x478] sm:$0xff]
    %v360 = vld [vmem:[#allocation5 + $0x480] sm:$0xff]
    %v361 = vld [vmem:[#allocation5 + $0x488] sm:$0xff]
    %v362 = vld [vmem:[#allocation5 + $0x490] sm:$0xff]
    %v363 = vld [vmem:[#allocation5 + $0x498] sm:$0xff]
    %v364 = vld [vmem:[#allocation5 + $0x4a0] sm:$0xff]
    %v365 = vld [vmem:[#allocation5 + $0x4a8] sm:$0xff]
    %v366 = vld [vmem:[#allocation5 + $0x4b0] sm:$0xff]
    %v367 = vld [vmem:[#allocation5 + $0x4b8] sm:$0xff]
    %v368 = vld [vmem:[#allocation5 + $0x4c0] sm:$0xff]
    %v369 = vld [vmem:[#allocation5 + $0x4c8] sm:$0xff]
    %v370 = vld [vmem:[#allocation5 + $0x4d0] sm:$0xff]
    %v371 = vld [vmem:[#allocation5 + $0x4d8] sm:$0xff]
    %v372 = vld [vmem:[#allocation5 + $0x4e0] sm:$0xff]
    %v373 = vld [vmem:[#allocation5 + $0x4e8] sm:$0xff]
    %v374 = vld [vmem:[#allocation5 + $0x4f0] sm:$0xff]
    %v375 = vld [vmem:[#allocation5 + $0x4f8] sm:$0xff]
    %v376 = vmul.f32 %v216, 0.5
    %v377 = vmul.f32 %v217, 0.5
    %v378 = vmul.f32 %v218, 0.5
    %v379 = vmul.f32 %v219, 0.5
    %v380 = vmul.f32 %v220, 0.5
    %v381 = vmul.f32 %v221, 0.5
    %v382 = vmul.f32 %v222, 0.5
    %v383 = vmul.f32 %v223, 0.5
    %v384 = vmul.f32 %v224, 0.5
    %v385 = vmul.f32 %v225, 0.5
    %v386 = vmul.f32 %v226, 0.5
    %v387 = vmul.f32 %v227, 0.5
    %v388 = vmul.f32 %v228, 0.5
    %v389 = vmul.f32 %v229, 0.5
    %v390 = vmul.f32 %v230, 0.5
    %v391 = vmul.f32 %v231, 0.5
    %v392 = vmul.f32 %v232, 0.5
    %v393 = vmul.f32 %v233, 0.5
    %v394 = vmul.f32 %v234, 0.5
    %v395 = vmul.f32 %v235, 0.5
    %v396 = vmul.f32 %v236, 0.5
    %v397 = vmul.f32 %v237, 0.5
    %v398 = vmul.f32 %v238, 0.5
    %v399 = vmul.f32 %v239, 0.5
    %v400 = vmul.f32 %v240, 0.5
    %v401 = vmul.f32 %v241, 0.5
    %v402 = vmul.f32 %v242, 0.5
    %v403 = vmul.f32 %v243, 0.5
    %v404 = vmul.f32 %v244, 0.5
    %v405 = vmul.f32 %v245, 0.5
    %v406 = vmul.f32 %v246, 0.5
    %v407 = vmul.f32 %v247, 0.5
    %v408 = vmul.f32 %v248, 0.5
    %v409 = vmul.f32 %v249, 0.5
    %v410 = vmul.f32 %v250, 0.5
    %v411 = vmul.f32 %v251, 0.5
    %v412 = vmul.f32 %v252, 0.5
    %v413 = vmul.f32 %v253, 0.5
    %v414 = vmul.f32 %v254, 0.5
    %v415 = vmul.f32 %v255, 0.5
    %v416 = vmul.f32 %v256, 0.5
    %v417 = vmul.f32 %v257, 0.5
    %v418 = vmul.f32 %v258, 0.5
    %v419 = vmul.f32 %v259, 0.5
    %v420 = vmul.f32 %v260, 0.5
    %v421 = vmul.f32 %v261, 0.5
    %v422 = vmul.f32 %v262, 0.5
    %v423 = vmul.f32 %v263, 0.5
    %v424 = vmul.f32 %v264, 0.5
    %v425 = vmul.f32 %v265, 0.5
    %v426 = vmul.f32 %v266, 0.5
    %v427 = vmul.f32 %v267, 0.5
    %v428 = vmul.f32 %v268, 0.5
    %v429 = vmul.f32 %v269, 0.5
    %v430 = vmul.f32 %v270, 0.5
    %v431 = vmul.f32 %v271, 0.5
    %v432 = vmul.f32 %v272, 0.5
    %v433 = vmul.f32 %v273, 0.5
    %v434 = vmul.f32 %v274, 0.5
    %v435 = vmul.f32 %v275, 0.5
    %v436 = vmul.f32 %v276, 0.5
    %v437 = vmul.f32 %v277, 0.5
    %v438 = vmul.f32 %v278, 0.5
    %v439 = vmul.f32 %v279, 0.5
    %v440 = vmul.f32 %v280, 0.5
    %v441 = vmul.f32 %v281, 0.5
    %v442 = vmul.f32 %v282, 0.5
    %v443 = vmul.f32 %v283, 0.5
    %v444 = vmul.f32 %v284, 0.5
    %v445 = vmul.f32 %v285, 0.5
    %v446 = vmul.f32 %v286, 0.5
    %v447 = vmul.f32 %v287, 0.5
    %v448 = vmul.f32 %v288, 0.5
    %v449 = vmul.f32 %v289, 0.5
    %v450 = vmul.f32 %v290, 0.5
    %v451 = vmul.f32 %v291, 0.5
    %v452 = vmul.f32 %v292, 0.5
    %v453 = vmul.f32 %v293, 0.5
    %v454 = vmul.f32 %v294, 0.5
    %v455 = vmul.f32 %v295, 0.5
    %v456 = vmul.f32 %v296, 0.5
    %v457 = vmul.f32 %v297, 0.5
    %v458 = vmul.f32 %v298, 0.5
    %v459 = vmul.f32 %v299, 0.5
    %v460 = vmul.f32 %v300, 0.5
    %v461 = vmul.f32 %v301, 0.5
    %v462 = vmul.f32 %v302, 0.5
    %v463 = vmul.f32 %v303, 0.5
    %v464 = vmul.f32 %v304, 0.5
    %v465 = vmul.f32 %v305, 0.5
    %v466 = vmul.f32 %v306, 0.5
    %v467 = vmul.f32 %v307, 0.5
    %v468 = vmul.f32 %v308, 0.5
    %v469 = vmul.f32 %v309, 0.5
    %v470 = vmul.f32 %v310, 0.5
    %v471 = vmul.f32 %v311, 0.5
    %v472 = vmul.f32 %v312, 0.5
    %v473 = vmul.f32 %v313, 0.5
    %v474 = vmul.f32 %v314, 0.5
    %v475 = vmul.f32 %v315, 0.5
    %v476 = vmul.f32 %v316, 0.5
    %v477 = vmul.f32 %v317, 0.5
    %v478 = vmul.f32 %v318, 0.5
    %v479 = vmul.f32 %v319, 0.5
    %v480 = vmul.f32 %v320, 0.5
    %v481 = vmul.f32 %v321, 0.5
    %v482 = vmul.f32 %v322, 0.5
    %v483 = vmul.f32 %v323, 0.5
    %v484 = vmul.f32 %v324, 0.5
    %v485 = vmul.f32 %v325, 0.5
    %v486 = vmul.f32 %v326, 0.5
    %v487 = vmul.f32 %v327, 0.5
    %v488 = vmul.f32 %v328, 0.5
    %v489 = vmul.f32 %v329, 0.5
    %v490 = vmul.f32 %v330, 0.5
    %v491 = vmul.f32 %v331, 0.5
    %v492 = vmul.f32 %v332, 0.5
    %v493 = vmul.f32 %v333, 0.5
    %v494 = vmul.f32 %v334, 0.5
    %v495 = vmul.f32 %v335, 0.5
    %v496 = vmul.f32 %v336, 0.5
    %v497 = vmul.f32 %v337, 0.5
    %v498 = vmul.f32 %v338, 0.5
    %v499 = vmul.f32 %v339, 0.5
    %v500 = vmul.f32 %v340, 0.5
    %v501 = vmul.f32 %v341, 0.5
    %v502 = vmul.f32 %v342, 0.5
    %v503 = vmul.f32 %v343, 0.5
    %v504 = vmul.f32 %v344, 0.5
    %v505 = vmul.f32 %v345, 0.5
    %v506 = vmul.f32 %v346, 0.5
    %v507 = vmul.f32 %v347, 0.5
    %v508 = vmul.f32 %v348, 0.5
    %v509 = vmul.f32 %v349, 0.5
    %v510 = vmul.f32 %v350, 0.5
    %v511 = vmul.f32 %v351, 0.5
    %v512 = vmul.f32 %v352, 0.5
    %v513 = vmul.f32 %v353, 0.5
    %v514 = vmul.f32 %v354, 0.5
    %v515 = vmul.f32 %v355, 0.5
    %v516 = vmul.f32 %v356, 0.5
    %v517 = vmul.f32 %v357, 0.5
    %v518 = vmul.f32 %v358, 0.5
    %v519 = vmul.f32 %v359, 0.5
    %v520 = vmul.f32 %v360, 0.5
    %v521 = vmul.f32 %v361, 0.5
    %v522 = vmul.f32 %v362, 0.5
    %v523 = vmul.f32 %v363, 0.5
    %v524 = vmul.f32 %v364, 0.5
    %v525 = vmul.f32 %v365, 0.5
    %v526 = vmul.f32 %v366, 0.5
    %v527 = vmul.f32 %v367, 0.5
    %v528 = vmul.f32 %v368, 0.5
    %v529 = vmul.f32 %v369, 0.5
    %v530 = vmul.f32 %v370, 0.5
    %v531 = vmul.f32 %v371, 0.5
    %v532 = vmul.f32 %v372, 0.5
    %v533 = vmul.f32 %v373, 0.5
    %v534 = vmul.f32 %v374, 0.5
    %v535 = vmul.f32 %v375, 0.5
    %v536 = vmul.f32 %v376, 1.442695
    %v537 = vpow.pop %v536
    %v538 = vmul.f32 %v377, 1.442695
    %v539 = vpow.pop %v538
    %v540 = vmul.f32 %v378, 1.442695
    %v541 = vpow.pop %v540
    %v542 = vmul.f32 %v379, 1.442695
    %v543 = vpow.pop %v542
    %v544 = vmul.f32 %v380, 1.442695
    %v545 = vpow.pop %v544
    %v546 = vmul.f32 %v381, 1.442695
    %v547 = vpow.pop %v546
    %v548 = vmul.f32 %v382, 1.442695
    %v549 = vpow.pop %v548
    %v550 = vmul.f32 %v383, 1.442695
    %v551 = vpow.pop %v550
    %v552 = vmul.f32 %v384, 1.442695
    %v553 = vpow.pop %v552
    %v554 = vmul.f32 %v385, 1.442695
    %v555 = vpow.pop %v554
    %v556 = vmul.f32 %v386, 1.442695
    %v557 = vpow.pop %v556
    %v558 = vmul.f32 %v387, 1.442695
    %v559 = vpow.pop %v558
    %v560 = vmul.f32 %v388, 1.442695
    %v561 = vpow.pop %v560
    %v562 = vmul.f32 %v389, 1.442695
    %v563 = vpow.pop %v562
    %v564 = vmul.f32 %v390, 1.442695
    %v565 = vpow.pop %v564
    %v566 = vmul.f32 %v391, 1.442695
    %v567 = vpow.pop %v566
    %v568 = vmul.f32 %v392, 1.442695
    %v569 = vpow.pop %v568
    %v570 = vmul.f32 %v393, 1.442695
    %v571 = vpow.pop %v570
    %v572 = vmul.f32 %v394, 1.442695
    %v573 = vpow.pop %v572
    %v574 = vmul.f32 %v395, 1.442695
    %v575 = vpow.pop %v574
    %v576 = vmul.f32 %v396, 1.442695
    %v577 = vpow.pop %v576
    %v578 = vmul.f32 %v397, 1.442695
    %v579 = vpow.pop %v578
    %v580 = vmul.f32 %v398, 1.442695
    %v581 = vpow.pop %v580
    %v582 = vmul.f32 %v399, 1.442695
    %v583 = vpow.pop %v582
    %v584 = vmul.f32 %v400, 1.442695
    %v585 = vpow.pop %v584
    %v586 = vmul.f32 %v401, 1.442695
    %v587 = vpow.pop %v586
    %v588 = vmul.f32 %v402, 1.442695
    %v589 = vpow.pop %v588
    %v590 = vmul.f32 %v403, 1.442695
    %v591 = vpow.pop %v590
    %v592 = vmul.f32 %v404, 1.442695
    %v593 = vpow.pop %v592
    %v594 = vmul.f32 %v405, 1.442695
    %v595 = vpow.pop %v594
    %v596 = vmul.f32 %v406, 1.442695
    %v597 = vpow.pop %v596
    %v598 = vmul.f32 %v407, 1.442695
    %v599 = vpow.pop %v598
    %v600 = vmul.f32 %v408, 1.442695
    %v601 = vpow.pop %v600
    %v602 = vmul.f32 %v409, 1.442695
    %v603 = vpow.pop %v602
    %v604 = vmul.f32 %v410, 1.442695
    %v605 = vpow.pop %v604
    %v606 = vmul.f32 %v411, 1.442695
    %v607 = vpow.pop %v606
    %v608 = vmul.f32 %v412, 1.442695
    %v609 = vpow.pop %v608
    %v610 = vmul.f32 %v413, 1.442695
    %v611 = vpow.pop %v610
    %v612 = vmul.f32 %v414, 1.442695
    %v613 = vpow.pop %v612
    %v614 = vmul.f32 %v415, 1.442695
    %v615 = vpow.pop %v614
    %v616 = vmul.f32 %v416, 1.442695
    %v617 = vpow.pop %v616
    %v618 = vmul.f32 %v417, 1.442695
    %v619 = vpow.pop %v618
    %v620 = vmul.f32 %v418, 1.442695
    %v621 = vpow.pop %v620
    %v622 = vmul.f32 %v419, 1.442695
    %v623 = vpow.pop %v622
    %v624 = vmul.f32 %v420, 1.442695
    %v625 = vpow.pop %v624
    %v626 = vmul.f32 %v421, 1.442695
    %v627 = vpow.pop %v626
    %v628 = vmul.f32 %v422, 1.442695
    %v629 = vpow.pop %v628
    %v630 = vmul.f32 %v423, 1.442695
    %v631 = vpow.pop %v630
    %v632 = vmul.f32 %v424, 1.442695
    %v633 = vpow.pop %v632
    %v634 = vmul.f32 %v425, 1.442695
    %v635 = vpow.pop %v634
    %v636 = vmul.f32 %v426, 1.442695
    %v637 = vpow.pop %v636
    %v638 = vmul.f32 %v427, 1.442695
    %v639 = vpow.pop %v638
    %v640 = vmul.f32 %v428, 1.442695
    %v641 = vpow.pop %v640
    %v642 = vmul.f32 %v429, 1.442695
    %v643 = vpow.pop %v642
    %v644 = vmul.f32 %v430, 1.442695
    %v645 = vpow.pop %v644
    %v646 = vmul.f32 %v431, 1.442695
    %v647 = vpow.pop %v646
    %v648 = vmul.f32 %v432, 1.442695
    %v649 = vpow.pop %v648
    %v650 = vmul.f32 %v433, 1.442695
    %v651 = vpow.pop %v650
    %v652 = vmul.f32 %v434, 1.442695
    %v653 = vpow.pop %v652
    %v654 = vmul.f32 %v435, 1.442695
    %v655 = vpow.pop %v654
    %v656 = vmul.f32 %v436, 1.442695
    %v657 = vpow.pop %v656
    %v658 = vmul.f32 %v437, 1.442695
    %v659 = vpow.pop %v658
    %v660 = vmul.f32 %v438, 1.442695
    %v661 = vpow.pop %v660
    %v662 = vmul.f32 %v439, 1.442695
    %v663 = vpow.pop %v662
    %v664 = vmul.f32 %v440, 1.442695
    %v665 = vpow.pop %v664
    %v666 = vmul.f32 %v441, 1.442695
    %v667 = vpow.pop %v666
    %v668 = vmul.f32 %v442, 1.442695
    %v669 = vpow.pop %v668
    %v670 = vmul.f32 %v443, 1.442695
    %v671 = vpow.pop %v670
    %v672 = vmul.f32 %v444, 1.442695
    %v673 = vpow.pop %v672
    %v674 = vmul.f32 %v445, 1.442695
    %v675 = vpow.pop %v674
    %v676 = vmul.f32 %v446, 1.442695
    %v677 = vpow.pop %v676
    %v678 = vmul.f32 %v447, 1.442695
    %v679 = vpow.pop %v678
    %v680 = vmul.f32 %v448, 1.442695
    %v681 = vpow.pop %v680
    %v682 = vmul.f32 %v449, 1.442695
    %v683 = vpow.pop %v682
    %v684 = vmul.f32 %v450, 1.442695
    %v685 = vpow.pop %v684
    %v686 = vmul.f32 %v451, 1.442695
    %v687 = vpow.pop %v686
    %v688 = vmul.f32 %v452, 1.442695
    %v689 = vpow.pop %v688
    %v690 = vmul.f32 %v453, 1.442695
    %v691 = vpow.pop %v690
    %v692 = vmul.f32 %v454, 1.442695
    %v693 = vpow.pop %v692
    %v694 = vmul.f32 %v455, 1.442695
    %v695 = vpow.pop %v694
    %v696 = vmul.f32 %v456, 1.442695
    %v697 = vpow.pop %v696
    %v698 = vmul.f32 %v457, 1.442695
    %v699 = vpow.pop %v698
    %v700 = vmul.f32 %v458, 1.442695
    %v701 = vpow.pop %v700
    %v702 = vmul.f32 %v459, 1.442695
    %v703 = vpow.pop %v702
    %v704 = vmul.f32 %v460, 1.442695
    %v705 = vpow.pop %v704
    %v706 = vmul.f32 %v461, 1.442695
    %v707 = vpow.pop %v706
    %v708 = vmul.f32 %v462, 1.442695
    %v709 = vpow.pop %v708
    %v710 = vmul.f32 %v463, 1.442695
    %v711 = vpow.pop %v710
    %v712 = vmul.f32 %v464, 1.442695
    %v713 = vpow.pop %v712
    %v714 = vmul.f32 %v465, 1.442695
    %v715 = vpow.pop %v714
    %v716 = vmul.f32 %v466, 1.442695
    %v717 = vpow.pop %v716
    %v718 = vmul.f32 %v467, 1.442695
    %v719 = vpow.pop %v718
    %v720 = vmul.f32 %v468, 1.442695
    %v721 = vpow.pop %v720
    %v722 = vmul.f32 %v469, 1.442695
    %v723 = vpow.pop %v722
    %v724 = vmul.f32 %v470, 1.442695
    %v725 = vpow.pop %v724
    %v726 = vmul.f32 %v471, 1.442695
    %v727 = vpow.pop %v726
    %v728 = vmul.f32 %v472, 1.442695
    %v729 = vpow.pop %v728
    %v730 = vmul.f32 %v473, 1.442695
    %v731 = vpow.pop %v730
    %v732 = vmul.f32 %v474, 1.442695
    %v733 = vpow.pop %v732
    %v734 = vmul.f32 %v475, 1.442695
    %v735 = vpow.pop %v734
    %v736 = vmul.f32 %v476, 1.442695
    %v737 = vpow.pop %v736
    %v738 = vmul.f32 %v477, 1.442695
    %v739 = vpow.pop %v738
    %v740 = vmul.f32 %v478, 1.442695
    %v741 = vpow.pop %v740
    %v742 = vmul.f32 %v479, 1.442695
    %v743 = vpow.pop %v742
    %v744 = vmul.f32 %v480, 1.442695
    %v745 = vpow.pop %v744
    %v746 = vmul.f32 %v481, 1.442695
    %v747 = vpow.pop %v746
    %v748 = vmul.f32 %v482, 1.442695
    %v749 = vpow.pop %v748
    %v750 = vmul.f32 %v483, 1.442695
    %v751 = vpow.pop %v750
    %v752 = vmul.f32 %v484, 1.442695
    %v753 = vpow.pop %v752
    %v754 = vmul.f32 %v485, 1.442695
    %v755 = vpow.pop %v754
    %v756 = vmul.f32 %v486, 1.442695
    %v757 = vpow.pop %v756
    %v758 = vmul.f32 %v487, 1.442695
    %v759 = vpow.pop %v758
    %v760 = vmul.f32 %v488, 1.442695
    %v761 = vpow.pop %v760
    %v762 = vmul.f32 %v489, 1.442695
    %v763 = vpow.pop %v762
    %v764 = vmul.f32 %v490, 1.442695
    %v765 = vpow.pop %v764
    %v766 = vmul.f32 %v491, 1.442695
    %v767 = vpow.pop %v766
    %v768 = vmul.f32 %v492, 1.442695
    %v769 = vpow.pop %v768
    %v770 = vmul.f32 %v493, 1.442695
    %v771 = vpow.pop %v770
    %v772 = vmul.f32 %v494, 1.442695
    %v773 = vpow.pop %v772
    %v774 = vmul.f32 %v495, 1.442695
    %v775 = vpow.pop %v774
    %v776 = vmul.f32 %v496, 1.442695
    %v777 = vpow.pop %v776
    %v778 = vmul.f32 %v497, 1.442695
    %v779 = vpow.pop %v778
    %v780 = vmul.f32 %v498, 1.442695
    %v781 = vpow.pop %v780
    %v782 = vmul.f32 %v499, 1.442695
    %v783 = vpow.pop %v782
    %v784 = vmul.f32 %v500, 1.442695
    %v785 = vpow.pop %v784
    %v786 = vmul.f32 %v501, 1.442695
    %v787 = vpow.pop %v786
    %v788 = vmul.f32 %v502, 1.442695
    %v789 = vpow.pop %v788
    %v790 = vmul.f32 %v503, 1.442695
    %v791 = vpow.pop %v790
    %v792 = vmul.f32 %v504, 1.442695
    %v793 = vpow.pop %v792
    %v794 = vmul.f32 %v505, 1.442695
    %v795 = vpow.pop %v794
    %v796 = vmul.f32 %v506, 1.442695
    %v797 = vpow.pop %v796
    %v798 = vmul.f32 %v507, 1.442695
    %v799 = vpow.pop %v798
    %v800 = vmul.f32 %v508, 1.442695
    %v801 = vpow.pop %v800
    %v802 = vmul.f32 %v509, 1.442695
    %v803 = vpow.pop %v802
    %v804 = vmul.f32 %v510, 1.442695
    %v805 = vpow.pop %v804
    %v806 = vmul.f32 %v511, 1.442695
    %v807 = vpow.pop %v806
    %v808 = vmul.f32 %v512, 1.442695
    %v809 = vpow.pop %v808
    %v810 = vmul.f32 %v513, 1.442695
    %v811 = vpow.pop %v810
    %v812 = vmul.f32 %v514, 1.442695
    %v813 = vpow.pop %v812
    %v814 = vmul.f32 %v515, 1.442695
    %v815 = vpow.pop %v814
    %v816 = vmul.f32 %v516, 1.442695
    %v817 = vpow.pop %v816
    %v818 = vmul.f32 %v517, 1.442695
    %v819 = vpow.pop %v818
    %v820 = vmul.f32 %v518, 1.442695
    %v821 = vpow.pop %v820
    %v822 = vmul.f32 %v519, 1.442695
    %v823 = vpow.pop %v822
    %v824 = vmul.f32 %v520, 1.442695
    %v825 = vpow.pop %v824
    %v826 = vmul.f32 %v521, 1.442695
    %v827 = vpow.pop %v826
    %v828 = vmul.f32 %v522, 1.442695
    %v829 = vpow.pop %v828
    %v830 = vmul.f32 %v523, 1.442695
    %v831 = vpow.pop %v830
    %v832 = vmul.f32 %v524, 1.442695
    %v833 = vpow.pop %v832
    %v834 = vmul.f32 %v525, 1.442695
    %v835 = vpow.pop %v834
    %v836 = vmul.f32 %v526, 1.442695
    %v837 = vpow.pop %v836
    %v838 = vmul.f32 %v527, 1.442695
    %v839 = vpow.pop %v838
    %v840 = vmul.f32 %v528, 1.442695
    %v841 = vpow.pop %v840
    %v842 = vmul.f32 %v529, 1.442695
    %v843 = vpow.pop %v842
    %v844 = vmul.f32 %v530, 1.442695
    %v845 = vpow.pop %v844
    %v846 = vmul.f32 %v531, 1.442695
    %v847 = vpow.pop %v846
    %v848 = vmul.f32 %v532, 1.442695
    %v849 = vpow.pop %v848
    %v850 = vmul.f32 %v533, 1.442695
    %v851 = vpow.pop %v850
    %v852 = vmul.f32 %v534, 1.442695
    %v853 = vpow.pop %v852
    %v854 = vmul.f32 %v535, 1.442695
    %v855 = vpow.pop %v854
    %v856 = vld [vmem:[#allocation7] sm:$0xff]
    %v857 = vld [vmem:[#allocation7 + $0x8] sm:$0xff]
    %v858 = vld [vmem:[#allocation7 + $0x10] sm:$0xff]
    %v859 = vld [vmem:[#allocation7 + $0x18] sm:$0xff]
    %v860 = vld [vmem:[#allocation7 + $0x20] sm:$0xff]
    %v861 = vld [vmem:[#allocation7 + $0x28] sm:$0xff]
    %v862 = vld [vmem:[#allocation7 + $0x30] sm:$0xff]
    %v863 = vld [vmem:[#allocation7 + $0x38] sm:$0xff]
    %v864 = vld [vmem:[#allocation7 + $0x40] sm:$0xff]
    %v865 = vld [vmem:[#allocation7 + $0x48] sm:$0xff]
    %v866 = vld [vmem:[#allocation7 + $0x50] sm:$0xff]
    %v867 = vld [vmem:[#allocation7 + $0x58] sm:$0xff]
    %v868 = vld [vmem:[#allocation7 + $0x60] sm:$0xff]
    %v869 = vld [vmem:[#allocation7 + $0x68] sm:$0xff]
    %v870 = vld [vmem:[#allocation7 + $0x70] sm:$0xff]
    %v871 = vld [vmem:[#allocation7 + $0x78] sm:$0xff]
    %v872 = vld [vmem:[#allocation7 + $0x80] sm:$0xff]
    %v873 = vld [vmem:[#allocation7 + $0x88] sm:$0xff]
    %v874 = vld [vmem:[#allocation7 + $0x90] sm:$0xff]
    %v875 = vld [vmem:[#allocation7 + $0x98] sm:$0xff]
    %v876 = vld [vmem:[#allocation7 + $0xa0] sm:$0xff]
    %v877 = vld [vmem:[#allocation7 + $0xa8] sm:$0xff]
    %v878 = vld [vmem:[#allocation7 + $0xb0] sm:$0xff]
    %v879 = vld [vmem:[#allocation7 + $0xb8] sm:$0xff]
    %v880 = vld [vmem:[#allocation7 + $0xc0] sm:$0xff]
    %v881 = vld [vmem:[#allocation7 + $0xc8] sm:$0xff]
    %v882 = vld [vmem:[#allocation7 + $0xd0] sm:$0xff]
    %v883 = vld [vmem:[#allocation7 + $0xd8] sm:$0xff]
    %v884 = vld [vmem:[#allocation7 + $0xe0] sm:$0xff]
    %v885 = vld [vmem:[#allocation7 + $0xe8] sm:$0xff]
    %v886 = vld [vmem:[#allocation7 + $0xf0] sm:$0xff]
    %v887 = vld [vmem:[#allocation7 + $0xf8] sm:$0xff]
    %v888 = vld [vmem:[#allocation7 + $0x100] sm:$0xff]
    %v889 = vld [vmem:[#allocation7 + $0x108] sm:$0xff]
    %v890 = vld [vmem:[#allocation7 + $0x110] sm:$0xff]
    %v891 = vld [vmem:[#allocation7 + $0x118] sm:$0xff]
    %v892 = vld [vmem:[#allocation7 + $0x120] sm:$0xff]
    %v893 = vld [vmem:[#allocation7 + $0x128] sm:$0xff]
    %v894 = vld [vmem:[#allocation7 + $0x130] sm:$0xff]
    %v895 = vld [vmem:[#allocation7 + $0x138] sm:$0xff]
    %v896 = vld [vmem:[#allocation7 + $0x140] sm:$0xff]
    %v897 = vld [vmem:[#allocation7 + $0x148] sm:$0xff]
    %v898 = vld [vmem:[#allocation7 + $0x150] sm:$0xff]
    %v899 = vld [vmem:[#allocation7 + $0x158] sm:$0xff]
    %v900 = vld [vmem:[#allocation7 + $0x160] sm:$0xff]
    %v901 = vld [vmem:[#allocation7 + $0x168] sm:$0xff]
    %v902 = vld [vmem:[#allocation7 + $0x170] sm:$0xff]
    %v903 = vld [vmem:[#allocation7 + $0x178] sm:$0xff]
    %v904 = vld [vmem:[#allocation7 + $0x180] sm:$0xff]
    %v905 = vld [vmem:[#allocation7 + $0x188] sm:$0xff]
    %v906 = vld [vmem:[#allocation7 + $0x190] sm:$0xff]
    %v907 = vld [vmem:[#allocation7 + $0x198] sm:$0xff]
    %v908 = vld [vmem:[#allocation7 + $0x1a0] sm:$0xff]
    %v909 = vld [vmem:[#allocation7 + $0x1a8] sm:$0xff]
    %v910 = vld [vmem:[#allocation7 + $0x1b0] sm:$0xff]
    %v911 = vld [vmem:[#allocation7 + $0x1b8] sm:$0xff]
    %v912 = vld [vmem:[#allocation7 + $0x1c0] sm:$0xff]
    %v913 = vld [vmem:[#allocation7 + $0x1c8] sm:$0xff]
    %v914 = vld [vmem:[#allocation7 + $0x1d0] sm:$0xff]
    %v915 = vld [vmem:[#allocation7 + $0x1d8] sm:$0xff]
    %v916 = vld [vmem:[#allocation7 + $0x1e0] sm:$0xff]
    %v917 = vld [vmem:[#allocation7 + $0x1e8] sm:$0xff]
    %v918 = vld [vmem:[#allocation7 + $0x1f0] sm:$0xff]
    %v919 = vld [vmem:[#allocation7 + $0x1f8] sm:$0xff]
    %v920 = vld [vmem:[#allocation7 + $0x200] sm:$0xff]
    %v921 = vld [vmem:[#allocation7 + $0x208] sm:$0xff]
    %v922 = vld [vmem:[#allocation7 + $0x210] sm:$0xff]
    %v923 = vld [vmem:[#allocation7 + $0x218] sm:$0xff]
    %v924 = vld [vmem:[#allocation7 + $0x220] sm:$0xff]
    %v925 = vld [vmem:[#allocation7 + $0x228] sm:$0xff]
    %v926 = vld [vmem:[#allocation7 + $0x230] sm:$0xff]
    %v927 = vld [vmem:[#allocation7 + $0x238] sm:$0xff]
    %v928 = vld [vmem:[#allocation7 + $0x240] sm:$0xff]
    %v929 = vld [vmem:[#allocation7 + $0x248] sm:$0xff]
    %v930 = vld [vmem:[#allocation7 + $0x250] sm:$0xff]
    %v931 = vld [vmem:[#allocation7 + $0x258] sm:$0xff]
    %v932 = vld [vmem:[#allocation7 + $0x260] sm:$0xff]
    %v933 = vld [vmem:[#allocation7 + $0x268] sm:$0xff]
    %v934 = vld [vmem:[#allocation7 + $0x270] sm:$0xff]
    %v935 = vld [vmem:[#allocation7 + $0x278] sm:$0xff]
    %v936 = vld [vmem:[#allocation7 + $0x280] sm:$0xff]
    %v937 = vld [vmem:[#allocation7 + $0x288] sm:$0xff]
    %v938 = vld [vmem:[#allocation7 + $0x290] sm:$0xff]
    %v939 = vld [vmem:[#allocation7 + $0x298] sm:$0xff]
    %v940 = vld [vmem:[#allocation7 + $0x2a0] sm:$0xff]
    %v941 = vld [vmem:[#allocation7 + $0x2a8] sm:$0xff]
    %v942 = vld [vmem:[#allocation7 + $0x2b0] sm:$0xff]
    %v943 = vld [vmem:[#allocation7 + $0x2b8] sm:$0xff]
    %v944 = vld [vmem:[#allocation7 + $0x2c0] sm:$0xff]
    %v945 = vld [vmem:[#allocation7 + $0x2c8] sm:$0xff]
    %v946 = vld [vmem:[#allocation7 + $0x2d0] sm:$0xff]
    %v947 = vld [vmem:[#allocation7 + $0x2d8] sm:$0xff]
    %v948 = vld [vmem:[#allocation7 + $0x2e0] sm:$0xff]
    %v949 = vld [vmem:[#allocation7 + $0x2e8] sm:$0xff]
    %v950 = vld [vmem:[#allocation7 + $0x2f0] sm:$0xff]
    %v951 = vld [vmem:[#allocation7 + $0x2f8] sm:$0xff]
    %v952 = vld [vmem:[#allocation7 + $0x300] sm:$0xff]
    %v953 = vld [vmem:[#allocation7 + $0x308] sm:$0xff]
    %v954 = vld [vmem:[#allocation7 + $0x310] sm:$0xff]
    %v955 = vld [vmem:[#allocation7 + $0x318] sm:$0xff]
    %v956 = vld [vmem:[#allocation7 + $0x320] sm:$0xff]
    %v957 = vld [vmem:[#allocation7 + $0x328] sm:$0xff]
    %v958 = vld [vmem:[#allocation7 + $0x330] sm:$0xff]
    %v959 = vld [vmem:[#allocation7 + $0x338] sm:$0xff]
    %v960 = vld [vmem:[#allocation7 + $0x340] sm:$0xff]
    %v961 = vld [vmem:[#allocation7 + $0x348] sm:$0xff]
    %v962 = vld [vmem:[#allocation7 + $0x350] sm:$0xff]
    %v963 = vld [vmem:[#allocation7 + $0x358] sm:$0xff]
    %v964 = vld [vmem:[#allocation7 + $0x360] sm:$0xff]
    %v965 = vld [vmem:[#allocation7 + $0x368] sm:$0xff]
    %v966 = vld [vmem:[#allocation7 + $0x370] sm:$0xff]
    %v967 = vld [vmem:[#allocation7 + $0x378] sm:$0xff]
    %v968 = vld [vmem:[#allocation7 + $0x380] sm:$0xff]
    %v969 = vld [vmem:[#allocation7 + $0x388] sm:$0xff]
    %v970 = vld [vmem:[#allocation7 + $0x390] sm:$0xff]
    %v971 = vld [vmem:[#allocation7 + $0x398] sm:$0xff]
    %v972 = vld [vmem:[#allocation7 + $0x3a0] sm:$0xff]
    %v973 = vld [vmem:[#allocation7 + $0x3a8] sm:$0xff]
    %v974 = vld [vmem:[#allocation7 + $0x3b0] sm:$0xff]
    %v975 = vld [vmem:[#allocation7 + $0x3b8] sm:$0xff]
    %v976 = vld [vmem:[#allocation7 + $0x3c0] sm:$0xff]
    %v977 = vld [vmem:[#allocation7 + $0x3c8] sm:$0xff]
    %v978 = vld [vmem:[#allocation7 + $0x3d0] sm:$0xff]
    %v979 = vld [vmem:[#allocation7 + $0x3d8] sm:$0xff]
    %v980 = vld [vmem:[#allocation7 + $0x3e0] sm:$0xff]
    %v981 = vld [vmem:[#allocation7 + $0x3e8] sm:$0xff]
    %v982 = vld [vmem:[#allocation7 + $0x3f0] sm:$0xff]
    %v983 = vld [vmem:[#allocation7 + $0x3f8] sm:$0xff]
    %v984 = vld [vmem:[#allocation7 + $0x400] sm:$0xff]
    %v985 = vld [vmem:[#allocation7 + $0x408] sm:$0xff]
    %v986 = vld [vmem:[#allocation7 + $0x410] sm:$0xff]
    %v987 = vld [vmem:[#allocation7 + $0x418] sm:$0xff]
    %v988 = vld [vmem:[#allocation7 + $0x420] sm:$0xff]
    %v989 = vld [vmem:[#allocation7 + $0x428] sm:$0xff]
    %v990 = vld [vmem:[#allocation7 + $0x430] sm:$0xff]
    %v991 = vld [vmem:[#allocation7 + $0x438] sm:$0xff]
    %v992 = vld [vmem:[#allocation7 + $0x440] sm:$0xff]
    %v993 = vld [vmem:[#allocation7 + $0x448] sm:$0xff]
    %v994 = vld [vmem:[#allocation7 + $0x450] sm:$0xff]
    %v995 = vld [vmem:[#allocation7 + $0x458] sm:$0xff]
    %v996 = vld [vmem:[#allocation7 + $0x460] sm:$0xff]
    %v997 = vld [vmem:[#allocation7 + $0x468] sm:$0xff]
    %v998 = vld [vmem:[#allocation7 + $0x470] sm:$0xff]
    %v999 = vld [vmem:[#allocation7 + $0x478] sm:$0xff]
    %v1000 = vld [vmem:[#allocation7 + $0x480] sm:$0xff]
    %v1001 = vld [vmem:[#allocation7 + $0x488] sm:$0xff]
    %v1002 = vld [vmem:[#allocation7 + $0x490] sm:$0xff]
    %v1003 = vld [vmem:[#allocation7 + $0x498] sm:$0xff]
    %v1004 = vld [vmem:[#allocation7 + $0x4a0] sm:$0xff]
    %v1005 = vld [vmem:[#allocation7 + $0x4a8] sm:$0xff]
    %v1006 = vld [vmem:[#allocation7 + $0x4b0] sm:$0xff]
    %v1007 = vld [vmem:[#allocation7 + $0x4b8] sm:$0xff]
    %v1008 = vld [vmem:[#allocation7 + $0x4c0] sm:$0xff]
    %v1009 = vld [vmem:[#allocation7 + $0x4c8] sm:$0xff]
    %v1010 = vld [vmem:[#allocation7 + $0x4d0] sm:$0xff]
    %v1011 = vld [vmem:[#allocation7 + $0x4d8] sm:$0xff]
    %v1012 = vld [vmem:[#allocation7 + $0x4e0] sm:$0xff]
    %v1013 = vld [vmem:[#allocation7 + $0x4e8] sm:$0xff]
    %v1014 = vld [vmem:[#allocation7 + $0x4f0] sm:$0xff]
    %v1015 = vld [vmem:[#allocation7 + $0x4f8] sm:$0xff]
    %v1016 = vmul.f32 %v537, %v856
    %v1017 = vmul.f32 %v539, %v857
    %v1018 = vmul.f32 %v541, %v858
    %v1019 = vmul.f32 %v543, %v859
    %v1020 = vmul.f32 %v545, %v860
    %v1021 = vmul.f32 %v547, %v861
    %v1022 = vmul.f32 %v549, %v862
    %v1023 = vmul.f32 %v551, %v863
    %v1024 = vmul.f32 %v553, %v864
    %v1025 = vmul.f32 %v555, %v865
    %v1026 = vmul.f32 %v557, %v866
    %v1027 = vmul.f32 %v559, %v867
    %v1028 = vmul.f32 %v561, %v868
    %v1029 = vmul.f32 %v563, %v869
    %v1030 = vmul.f32 %v565, %v870
    %v1031 = vmul.f32 %v567, %v871
    %v1032 = vmul.f32 %v569, %v872
    %v1033 = vmul.f32 %v571, %v873
    %v1034 = vmul.f32 %v573, %v874
    %v1035 = vmul.f32 %v575, %v875
    %v1036 = vmul.f32 %v577, %v876
    %v1037 = vmul.f32 %v579, %v877
    %v1038 = vmul.f32 %v581, %v878
    %v1039 = vmul.f32 %v583, %v879
    %v1040 = vmul.f32 %v585, %v880
    %v1041 = vmul.f32 %v587, %v881
    %v1042 = vmul.f32 %v589, %v882
    %v1043 = vmul.f32 %v591, %v883
    %v1044 = vmul.f32 %v593, %v884
    %v1045 = vmul.f32 %v595, %v885
    %v1046 = vmul.f32 %v597, %v886
    %v1047 = vmul.f32 %v599, %v887
    %v1048 = vmul.f32 %v601, %v888
    %v1049 = vmul.f32 %v603, %v889
    %v1050 = vmul.f32 %v605, %v890
    %v1051 = vmul.f32 %v607, %v891
    %v1052 = vmul.f32 %v609, %v892
    %v1053 = vmul.f32 %v611, %v893
    %v1054 = vmul.f32 %v613, %v894
    %v1055 = vmul.f32 %v615, %v895
    %v1056 = vmul.f32 %v617, %v896
    %v1057 = vmul.f32 %v619, %v897
    %v1058 = vmul.f32 %v621, %v898
    %v1059 = vmul.f32 %v623, %v899
    %v1060 = vmul.f32 %v625, %v900
    %v1061 = vmul.f32 %v627, %v901
    %v1062 = vmul.f32 %v629, %v902
    %v1063 = vmul.f32 %v631, %v903
    %v1064 = vmul.f32 %v633, %v904
    %v1065 = vmul.f32 %v635, %v905
    %v1066 = vmul.f32 %v637, %v906
    %v1067 = vmul.f32 %v639, %v907
    %v1068 = vmul.f32 %v641, %v908
    %v1069 = vmul.f32 %v643, %v909
    %v1070 = vmul.f32 %v645, %v910
    %v1071 = vmul.f32 %v647, %v911
    %v1072 = vmul.f32 %v649, %v912
    %v1073 = vmul.f32 %v651, %v913
    %v1074 = vmul.f32 %v653, %v914
    %v1075 = vmul.f32 %v655, %v915
    %v1076 = vmul.f32 %v657, %v916
    %v1077 = vmul.f32 %v659, %v917
    %v1078 = vmul.f32 %v661, %v918
    %v1079 = vmul.f32 %v663, %v919
    %v1080 = vmul.f32 %v665, %v920
    %v1081 = vmul.f32 %v667, %v921
    %v1082 = vmul.f32 %v669, %v922
    %v1083 = vmul.f32 %v671, %v923
    %v1084 = vmul.f32 %v673, %v924
    %v1085 = vmul.f32 %v675, %v925
    %v1086 = vmul.f32 %v677, %v926
    %v1087 = vmul.f32 %v679, %v927
    %v1088 = vmul.f32 %v681, %v928
    %v1089 = vmul.f32 %v683, %v929
    %v1090 = vmul.f32 %v685, %v930
    %v1091 = vmul.f32 %v687, %v931
    %v1092 = vmul.f32 %v689, %v932
    %v1093 = vmul.f32 %v691, %v933
    %v1094 = vmul.f32 %v693, %v934
    %v1095 = vmul.f32 %v695, %v935
    %v1096 = vmul.f32 %v697, %v936
    %v1097 = vmul.f32 %v699, %v937
    %v1098 = vmul.f32 %v701, %v938
    %v1099 = vmul.f32 %v703, %v939
    %v1100 = vmul.f32 %v705, %v940
    %v1101 = vmul.f32 %v707, %v941
    %v1102 = vmul.f32 %v709, %v942
    %v1103 = vmul.f32 %v711, %v943
    %v1104 = vmul.f32 %v713, %v944
    %v1105 = vmul.f32 %v715, %v945
    %v1106 = vmul.f32 %v717, %v946
    %v1107 = vmul.f32 %v719, %v947
    %v1108 = vmul.f32 %v721, %v948
    %v1109 = vmul.f32 %v723, %v949
    %v1110 = vmul.f32 %v725, %v950
    %v1111 = vmul.f32 %v727, %v951
    %v1112 = vmul.f32 %v729, %v952
    %v1113 = vmul.f32 %v731, %v953
    %v1114 = vmul.f32 %v733, %v954
    %v1115 = vmul.f32 %v735, %v955
    %v1116 = vmul.f32 %v737, %v956
    %v1117 = vmul.f32 %v739, %v957
    %v1118 = vmul.f32 %v741, %v958
    %v1119 = vmul.f32 %v743, %v959
    %v1120 = vmul.f32 %v745, %v960
    %v1121 = vmul.f32 %v747, %v961
    %v1122 = vmul.f32 %v749, %v962
    %v1123 = vmul.f32 %v751, %v963
    %v1124 = vmul.f32 %v753, %v964
    %v1125 = vmul.f32 %v755, %v965
    %v1126 = vmul.f32 %v757, %v966
    %v1127 = vmul.f32 %v759, %v967
    %v1128 = vmul.f32 %v761, %v968
    %v1129 = vmul.f32 %v763, %v969
    %v1130 = vmul.f32 %v765, %v970
    %v1131 = vmul.f32 %v767, %v971
    %v1132 = vmul.f32 %v769, %v972
    %v1133 = vmul.f32 %v771, %v973
    %v1134 = vmul.f32 %v773, %v974
    %v1135 = vmul.f32 %v775, %v975
    %v1136 = vmul.f32 %v777, %v976
    %v1137 = vmul.f32 %v779, %v977
    %v1138 = vmul.f32 %v781, %v978
    %v1139 = vmul.f32 %v783, %v979
    %v1140 = vmul.f32 %v785, %v980
    %v1141 = vmul.f32 %v787, %v981
    %v1142 = vmul.f32 %v789, %v982
    %v1143 = vmul.f32 %v791, %v983
    %v1144 = vmul.f32 %v793, %v984
    %v1145 = vmul.f32 %v795, %v985
    %v1146 = vmul.f32 %v797, %v986
    %v1147 = vmul.f32 %v799, %v987
    %v1148 = vmul.f32 %v801, %v988
    %v1149 = vmul.f32 %v803, %v989
    %v1150 = vmul.f32 %v805, %v990
    %v1151 = vmul.f32 %v807, %v991
    %v1152 = vmul.f32 %v809, %v992
    %v1153 = vmul.f32 %v811, %v993
    %v1154 = vmul.f32 %v813, %v994
    %v1155 = vmul.f32 %v815, %v995
    %v1156 = vmul.f32 %v817, %v996
    %v1157 = vmul.f32 %v819, %v997
    %v1158 = vmul.f32 %v821, %v998
    %v1159 = vmul.f32 %v823, %v999
    %v1160 = vmul.f32 %v825, %v1000
    %v1161 = vmul.f32 %v827, %v1001
    %v1162 = vmul.f32 %v829, %v1002
    %v1163 = vmul.f32 %v831, %v1003
    %v1164 = vmul.f32 %v833, %v1004
    %v1165 = vmul.f32 %v835, %v1005
    %v1166 = vmul.f32 %v837, %v1006
    %v1167 = vmul.f32 %v839, %v1007
    %v1168 = vmul.f32 %v841, %v1008
    %v1169 = vmul.f32 %v843, %v1009
    %v1170 = vmul.f32 %v845, %v1010
    %v1171 = vmul.f32 %v847, %v1011
    %v1172 = vmul.f32 %v849, %v1012
    %v1173 = vmul.f32 %v851, %v1013
    %v1174 = vmul.f32 %v853, %v1014
    %v1175 = vmul.f32 %v855, %v1015
    %v1176 = vadd.f32 %v56, %v1016
    %v1177 = vadd.f32 %v57, %v1017
    %v1178 = vadd.f32 %v58, %v1018
    %v1179 = vadd.f32 %v59, %v1019
    %v1180 = vadd.f32 %v60, %v1020
    %v1181 = vadd.f32 %v61, %v1021
    %v1182 = vadd.f32 %v62, %v1022
    %v1183 = vadd.f32 %v63, %v1023
    %v1184 = vadd.f32 %v64, %v1024
    %v1185 = vadd.f32 %v65, %v1025
    %v1186 = vadd.f32 %v66, %v1026
    %v1187 = vadd.f32 %v67, %v1027
    %v1188 = vadd.f32 %v68, %v1028
    %v1189 = vadd.f32 %v69, %v1029
    %v1190 = vadd.f32 %v70, %v1030
    %v1191 = vadd.f32 %v71, %v1031
    %v1192 = vadd.f32 %v72, %v1032
    %v1193 = vadd.f32 %v73, %v1033
    %v1194 = vadd.f32 %v74, %v1034
    %v1195 = vadd.f32 %v75, %v1035
    %v1196 = vadd.f32 %v76, %v1036
    %v1197 = vadd.f32 %v77, %v1037
    %v1198 = vadd.f32 %v78, %v1038
    %v1199 = vadd.f32 %v79, %v1039
    %v1200 = vadd.f32 %v80, %v1040
    %v1201 = vadd.f32 %v81, %v1041
    %v1202 = vadd.f32 %v82, %v1042
    %v1203 = vadd.f32 %v83, %v1043
    %v1204 = vadd.f32 %v84, %v1044
    %v1205 = vadd.f32 %v85, %v1045
    %v1206 = vadd.f32 %v86, %v1046
    %v1207 = vadd.f32 %v87, %v1047
    %v1208 = vadd.f32 %v88, %v1048
    %v1209 = vadd.f32 %v89, %v1049
    %v1210 = vadd.f32 %v90, %v1050
    %v1211 = vadd.f32 %v91, %v1051
    %v1212 = vadd.f32 %v92, %v1052
    %v1213 = vadd.f32 %v93, %v1053
    %v1214 = vadd.f32 %v94, %v1054
    %v1215 = vadd.f32 %v95, %v1055
    %v1216 = vadd.f32 %v96, %v1056
    %v1217 = vadd.f32 %v97, %v1057
    %v1218 = vadd.f32 %v98, %v1058
    %v1219 = vadd.f32 %v99, %v1059
    %v1220 = vadd.f32 %v100, %v1060
    %v1221 = vadd.f32 %v101, %v1061
    %v1222 = vadd.f32 %v102, %v1062
    %v1223 = vadd.f32 %v103, %v1063
    %v1224 = vadd.f32 %v104, %v1064
    %v1225 = vadd.f32 %v105, %v1065
    %v1226 = vadd.f32 %v106, %v1066
    %v1227 = vadd.f32 %v107, %v1067
    %v1228 = vadd.f32 %v108, %v1068
    %v1229 = vadd.f32 %v109, %v1069
    %v1230 = vadd.f32 %v110, %v1070
    %v1231 = vadd.f32 %v111, %v1071
    %v1232 = vadd.f32 %v112, %v1072
    %v1233 = vadd.f32 %v113, %v1073
    %v1234 = vadd.f32 %v114, %v1074
    %v1235 = vadd.f32 %v115, %v1075
    %v1236 = vadd.f32 %v116, %v1076
    %v1237 = vadd.f32 %v117, %v1077
    %v1238 = vadd.f32 %v118, %v1078
    %v1239 = vadd.f32 %v119, %v1079
    %v1240 = vadd.f32 %v120, %v1080
    %v1241 = vadd.f32 %v121, %v1081
    %v1242 = vadd.f32 %v122, %v1082
    %v1243 = vadd.f32 %v123, %v1083
    %v1244 = vadd.f32 %v124, %v1084
    %v1245 = vadd.f32 %v125, %v1085
    %v1246 = vadd.f32 %v126, %v1086
    %v1247 = vadd.f32 %v127, %v1087
    %v1248 = vadd.f32 %v128, %v1088
    %v1249 = vadd.f32 %v129, %v1089
    %v1250 = vadd.f32 %v130, %v1090
    %v1251 = vadd.f32 %v131, %v1091
    %v1252 = vadd.f32 %v132, %v1092
    %v1253 = vadd.f32 %v133, %v1093
    %v1254 = vadd.f32 %v134, %v1094
    %v1255 = vadd.f32 %v135, %v1095
    %v1256 = vadd.f32 %v136, %v1096
    %v1257 = vadd.f32 %v137, %v1097
    %v1258 = vadd.f32 %v138, %v1098
    %v1259 = vadd.f32 %v139, %v1099
    %v1260 = vadd.f32 %v140, %v1100
    %v1261 = vadd.f32 %v141, %v1101
    %v1262 = vadd.f32 %v142, %v1102
    %v1263 = vadd.f32 %v143, %v1103
    %v1264 = vadd.f32 %v144, %v1104
    %v1265 = vadd.f32 %v145, %v1105
    %v1266 = vadd.f32 %v146, %v1106
    %v1267 = vadd.f32 %v147, %v1107
    %v1268 = vadd.f32 %v148, %v1108
    %v1269 = vadd.f32 %v149, %v1109
    %v1270 = vadd.f32 %v150, %v1110
    %v1271 = vadd.f32 %v151, %v1111
    %v1272 = vadd.f32 %v152, %v1112
    %v1273 = vadd.f32 %v153, %v1113
    %v1274 = vadd.f32 %v154, %v1114
    %v1275 = vadd.f32 %v155, %v1115
    %v1276 = vadd.f32 %v156, %v1116
    %v1277 = vadd.f32 %v157, %v1117
    %v1278 = vadd.f32 %v158, %v1118
    %v1279 = vadd.f32 %v159, %v1119
    %v1280 = vadd.f32 %v160, %v1120
    %v1281 = vadd.f32 %v161, %v1121
    %v1282 = vadd.f32 %v162, %v1122
    %v1283 = vadd.f32 %v163, %v1123
    %v1284 = vadd.f32 %v164, %v1124
    %v1285 = vadd.f32 %v165, %v1125
    %v1286 = vadd.f32 %v166, %v1126
    %v1287 = vadd.f32 %v167, %v1127
    %v1288 = vadd.f32 %v168, %v1128
    %v1289 = vadd.f32 %v169, %v1129
    %v1290 = vadd.f32 %v170, %v1130
    %v1291 = vadd.f32 %v171, %v1131
    %v1292 = vadd.f32 %v172, %v1132
    %v1293 = vadd.f32 %v173, %v1133
    %v1294 = vadd.f32 %v174, %v1134
    %v1295 = vadd.f32 %v175, %v1135
    %v1296 = vadd.f32 %v176, %v1136
    %v1297 = vadd.f32 %v177, %v1137
    %v1298 = vadd.f32 %v178, %v1138
    %v1299 = vadd.f32 %v179, %v1139
    %v1300 = vadd.f32 %v180, %v1140
    %v1301 = vadd.f32 %v181, %v1141
    %v1302 = vadd.f32 %v182, %v1142
    %v1303 = vadd.f32 %v183, %v1143
    %v1304 = vadd.f32 %v184, %v1144
    %v1305 = vadd.f32 %v185, %v1145
    %v1306 = vadd.f32 %v186, %v1146
    %v1307 = vadd.f32 %v187, %v1147
    %v1308 = vadd.f32 %v188, %v1148
    %v1309 = vadd.f32 %v189, %v1149
    %v1310 = vadd.f32 %v190, %v1150
    %v1311 = vadd.f32 %v191, %v1151
    %v1312 = vadd.f32 %v192, %v1152
    %v1313 = vadd.f32 %v193, %v1153
    %v1314 = vadd.f32 %v194, %v1154
    %v1315 = vadd.f32 %v195, %v1155
    %v1316 = vadd.f32 %v196, %v1156
    %v1317 = vadd.f32 %v197, %v1157
    %v1318 = vadd.f32 %v198, %v1158
    %v1319 = vadd.f32 %v199, %v1159
    %v1320 = vadd.f32 %v200, %v1160
    %v1321 = vadd.f32 %v201, %v1161
    %v1322 = vadd.f32 %v202, %v1162
    %v1323 = vadd.f32 %v203, %v1163
    %v1324 = vadd.f32 %v204, %v1164
    %v1325 = vadd.f32 %v205, %v1165
    %v1326 = vadd.f32 %v206, %v1166
    %v1327 = vadd.f32 %v207, %v1167
    %v1328 = vadd.f32 %v208, %v1168
    %v1329 = vadd.f32 %v209, %v1169
    %v1330 = vadd.f32 %v210, %v1170
    %v1331 = vadd.f32 %v211, %v1171
    %v1332 = vadd.f32 %v212, %v1172
    %v1333 = vadd.f32 %v213, %v1173
    %v1334 = vadd.f32 %v214, %v1174
    %v1335 = vadd.f32 %v215, %v1175
    %1336 = vst [vmem:[#allocation8] sm:$0xff] %v1176
    %1337 = vst [vmem:[#allocation8 + $0x8] sm:$0xff] %v1177
    %1338 = vst [vmem:[#allocation8 + $0x10] sm:$0xff] %v1178
    %1339 = vst [vmem:[#allocation8 + $0x18] sm:$0xff] %v1179
    %1340 = vst [vmem:[#allocation8 + $0x20] sm:$0xff] %v1180
    %1341 = vst [vmem:[#allocation8 + $0x28] sm:$0xff] %v1181
    %1342 = vst [vmem:[#allocation8 + $0x30] sm:$0xff] %v1182
    %1343 = vst [vmem:[#allocation8 + $0x38] sm:$0xff] %v1183
    %1344 = vst [vmem:[#allocation8 + $0x40] sm:$0xff] %v1184
    %1345 = vst [vmem:[#allocation8 + $0x48] sm:$0xff] %v1185
    %1346 = vst [vmem:[#allocation8 + $0x50] sm:$0xff] %v1186
    %1347 = vst [vmem:[#allocation8 + $0x58] sm:$0xff] %v1187
    %1348 = vst [vmem:[#allocation8 + $0x60] sm:$0xff] %v1188
    %1349 = vst [vmem:[#allocation8 + $0x68] sm:$0xff] %v1189
    %1350 = vst [vmem:[#allocation8 + $0x70] sm:$0xff] %v1190
    %1351 = vst [vmem:[#allocation8 + $0x78] sm:$0xff] %v1191
    %1352 = vst [vmem:[#allocation8 + $0x80] sm:$0xff] %v1192
    %1353 = vst [vmem:[#allocation8 + $0x88] sm:$0xff] %v1193
    %1354 = vst [vmem:[#allocation8 + $0x90] sm:$0xff] %v1194
    %1355 = vst [vmem:[#allocation8 + $0x98] sm:$0xff] %v1195
    %1356 = vst [vmem:[#allocation8 + $0xa0] sm:$0xff] %v1196
    %1357 = vst [vmem:[#allocation8 + $0xa8] sm:$0xff] %v1197
    %1358 = vst [vmem:[#allocation8 + $0xb0] sm:$0xff] %v1198
    %1359 = vst [vmem:[#allocation8 + $0xb8] sm:$0xff] %v1199
    %1360 = vst [vmem:[#allocation8 + $0xc0] sm:$0xff] %v1200
    %1361 = vst [vmem:[#allocation8 + $0xc8] sm:$0xff] %v1201
    %1362 = vst [vmem:[#allocation8 + $0xd0] sm:$0xff] %v1202
    %1363 = vst [vmem:[#allocation8 + $0xd8] sm:$0xff] %v1203
    %1364 = vst [vmem:[#allocation8 + $0xe0] sm:$0xff] %v1204
    %1365 = vst [vmem:[#allocation8 + $0xe8] sm:$0xff] %v1205
    %1366 = vst [vmem:[#allocation8 + $0xf0] sm:$0xff] %v1206
    %1367 = vst [vmem:[#allocation8 + $0xf8] sm:$0xff] %v1207
    %1368 = vst [vmem:[#allocation8 + $0x100] sm:$0xff] %v1208
    %1369 = vst [vmem:[#allocation8 + $0x108] sm:$0xff] %v1209
    %1370 = vst [vmem:[#allocation8 + $0x110] sm:$0xff] %v1210
    %1371 = vst [vmem:[#allocation8 + $0x118] sm:$0xff] %v1211
    %1372 = vst [vmem:[#allocation8 + $0x120] sm:$0xff] %v1212
    %1373 = vst [vmem:[#allocation8 + $0x128] sm:$0xff] %v1213
    %1374 = vst [vmem:[#allocation8 + $0x130] sm:$0xff] %v1214
    %1375 = vst [vmem:[#allocation8 + $0x138] sm:$0xff] %v1215
    %1376 = vst [vmem:[#allocation8 + $0x140] sm:$0xff] %v1216
    %1377 = vst [vmem:[#allocation8 + $0x148] sm:$0xff] %v1217
    %1378 = vst [vmem:[#allocation8 + $0x150] sm:$0xff] %v1218
    %1379 = vst [vmem:[#allocation8 + $0x158] sm:$0xff] %v1219
    %1380 = vst [vmem:[#allocation8 + $0x160] sm:$0xff] %v1220
    %1381 = vst [vmem:[#allocation8 + $0x168] sm:$0xff] %v1221
    %1382 = vst [vmem:[#allocation8 + $0x170] sm:$0xff] %v1222
    %1383 = vst [vmem:[#allocation8 + $0x178] sm:$0xff] %v1223
    %1384 = vst [vmem:[#allocation8 + $0x180] sm:$0xff] %v1224
    %1385 = vst [vmem:[#allocation8 + $0x188] sm:$0xff] %v1225
    %1386 = vst [vmem:[#allocation8 + $0x190] sm:$0xff] %v1226
    %1387 = vst [vmem:[#allocation8 + $0x198] sm:$0xff] %v1227
    %1388 = vst [vmem:[#allocation8 + $0x1a0] sm:$0xff] %v1228
    %1389 = vst [vmem:[#allocation8 + $0x1a8] sm:$0xff] %v1229
    %1390 = vst [vmem:[#allocation8 + $0x1b0] sm:$0xff] %v1230
    %1391 = vst [vmem:[#allocation8 + $0x1b8] sm:$0xff] %v1231
    %1392 = vst [vmem:[#allocation8 + $0x1c0] sm:$0xff] %v1232
    %1393 = vst [vmem:[#allocation8 + $0x1c8] sm:$0xff] %v1233
    %1394 = vst [vmem:[#allocation8 + $0x1d0] sm:$0xff] %v1234
    %1395 = vst [vmem:[#allocation8 + $0x1d8] sm:$0xff] %v1235
    %1396 = vst [vmem:[#allocation8 + $0x1e0] sm:$0xff] %v1236
    %1397 = vst [vmem:[#allocation8 + $0x1e8] sm:$0xff] %v1237
    %1398 = vst [vmem:[#allocation8 + $0x1f0] sm:$0xff] %v1238
    %1399 = vst [vmem:[#allocation8 + $0x1f8] sm:$0xff] %v1239
    %1400 = vst [vmem:[#allocation8 + $0x200] sm:$0xff] %v1240
    %1401 = vst [vmem:[#allocation8 + $0x208] sm:$0xff] %v1241
    %1402 = vst [vmem:[#allocation8 + $0x210] sm:$0xff] %v1242
    %1403 = vst [vmem:[#allocation8 + $0x218] sm:$0xff] %v1243
    %1404 = vst [vmem:[#allocation8 + $0x220] sm:$0xff] %v1244
    %1405 = vst [vmem:[#allocation8 + $0x228] sm:$0xff] %v1245
    %1406 = vst [vmem:[#allocation8 + $0x230] sm:$0xff] %v1246
    %1407 = vst [vmem:[#allocation8 + $0x238] sm:$0xff] %v1247
    %1408 = vst [vmem:[#allocation8 + $0x240] sm:$0xff] %v1248
    %1409 = vst [vmem:[#allocation8 + $0x248] sm:$0xff] %v1249
    %1410 = vst [vmem:[#allocation8 + $0x250] sm:$0xff] %v1250
    %1411 = vst [vmem:[#allocation8 + $0x258] sm:$0xff] %v1251
    %1412 = vst [vmem:[#allocation8 + $0x260] sm:$0xff] %v1252
    %1413 = vst [vmem:[#allocation8 + $0x268] sm:$0xff] %v1253
    %1414 = vst [vmem:[#allocation8 + $0x270] sm:$0xff] %v1254
    %1415 = vst [vmem:[#allocation8 + $0x278] sm:$0xff] %v1255
    %1416 = vst [vmem:[#allocation8 + $0x280] sm:$0xff] %v1256
    %1417 = vst [vmem:[#allocation8 + $0x288] sm:$0xff] %v1257
    %1418 = vst [vmem:[#allocation8 + $0x290] sm:$0xff] %v1258
    %1419 = vst [vmem:[#allocation8 + $0x298] sm:$0xff] %v1259
    %1420 = vst [vmem:[#allocation8 + $0x2a0] sm:$0xff] %v1260
    %1421 = vst [vmem:[#allocation8 + $0x2a8] sm:$0xff] %v1261
    %1422 = vst [vmem:[#allocation8 + $0x2b0] sm:$0xff] %v1262
    %1423 = vst [vmem:[#allocation8 + $0x2b8] sm:$0xff] %v1263
    %1424 = vst [vmem:[#allocation8 + $0x2c0] sm:$0xff] %v1264
    %1425 = vst [vmem:[#allocation8 + $0x2c8] sm:$0xff] %v1265
    %1426 = vst [vmem:[#allocation8 + $0x2d0] sm:$0xff] %v1266
    %1427 = vst [vmem:[#allocation8 + $0x2d8] sm:$0xff] %v1267
    %1428 = vst [vmem:[#allocation8 + $0x2e0] sm:$0xff] %v1268
    %1429 = vst [vmem:[#allocation8 + $0x2e8] sm:$0xff] %v1269
    %1430 = vst [vmem:[#allocation8 + $0x2f0] sm:$0xff] %v1270
    %1431 = vst [vmem:[#allocation8 + $0x2f8] sm:$0xff] %v1271
    %1432 = vst [vmem:[#allocation8 + $0x300] sm:$0xff] %v1272
    %1433 = vst [vmem:[#allocation8 + $0x308] sm:$0xff] %v1273
    %1434 = vst [vmem:[#allocation8 + $0x310] sm:$0xff] %v1274
    %1435 = vst [vmem:[#allocation8 + $0x318] sm:$0xff] %v1275
    %1436 = vst [vmem:[#allocation8 + $0x320] sm:$0xff] %v1276
    %1437 = vst [vmem:[#allocation8 + $0x328] sm:$0xff] %v1277
    %1438 = vst [vmem:[#allocation8 + $0x330] sm:$0xff] %v1278
    %1439 = vst [vmem:[#allocation8 + $0x338] sm:$0xff] %v1279
    %1440 = vst [vmem:[#allocation8 + $0x340] sm:$0xff] %v1280
    %1441 = vst [vmem:[#allocation8 + $0x348] sm:$0xff] %v1281
    %1442 = vst [vmem:[#allocation8 + $0x350] sm:$0xff] %v1282
    %1443 = vst [vmem:[#allocation8 + $0x358] sm:$0xff] %v1283
    %1444 = vst [vmem:[#allocation8 + $0x360] sm:$0xff] %v1284
    %1445 = vst [vmem:[#allocation8 + $0x368] sm:$0xff] %v1285
    %1446 = vst [vmem:[#allocation8 + $0x370] sm:$0xff] %v1286
    %1447 = vst [vmem:[#allocation8 + $0x378] sm:$0xff] %v1287
    %1448 = vst [vmem:[#allocation8 + $0x380] sm:$0xff] %v1288
    %1449 = vst [vmem:[#allocation8 + $0x388] sm:$0xff] %v1289
    %1450 = vst [vmem:[#allocation8 + $0x390] sm:$0xff] %v1290
    %1451 = vst [vmem:[#allocation8 + $0x398] sm:$0xff] %v1291
    %1452 = vst [vmem:[#allocation8 + $0x3a0] sm:$0xff] %v1292
    %1453 = vst [vmem:[#allocation8 + $0x3a8] sm:$0xff] %v1293
    %1454 = vst [vmem:[#allocation8 + $0x3b0] sm:$0xff] %v1294
    %1455 = vst [vmem:[#allocation8 + $0x3b8] sm:$0xff] %v1295
    %1456 = vst [vmem:[#allocation8 + $0x3c0] sm:$0xff] %v1296
    %1457 = vst [vmem:[#allocation8 + $0x3c8] sm:$0xff] %v1297
    %1458 = vst [vmem:[#allocation8 + $0x3d0] sm:$0xff] %v1298
    %1459 = vst [vmem:[#allocation8 + $0x3d8] sm:$0xff] %v1299
    %1460 = vst [vmem:[#allocation8 + $0x3e0] sm:$0xff] %v1300
    %1461 = vst [vmem:[#allocation8 + $0x3e8] sm:$0xff] %v1301
    %1462 = vst [vmem:[#allocation8 + $0x3f0] sm:$0xff] %v1302
    %1463 = vst [vmem:[#allocation8 + $0x3f8] sm:$0xff] %v1303
    %1464 = vst [vmem:[#allocation8 + $0x400] sm:$0xff] %v1304
    %1465 = vst [vmem:[#allocation8 + $0x408] sm:$0xff] %v1305
    %1466 = vst [vmem:[#allocation8 + $0x410] sm:$0xff] %v1306
    %1467 = vst [vmem:[#allocation8 + $0x418] sm:$0xff] %v1307
    %1468 = vst [vmem:[#allocation8 + $0x420] sm:$0xff] %v1308
    %1469 = vst [vmem:[#allocation8 + $0x428] sm:$0xff] %v1309
    %1470 = vst [vmem:[#allocation8 + $0x430] sm:$0xff] %v1310
    %1471 = vst [vmem:[#allocation8 + $0x438] sm:$0xff] %v1311
    %1472 = vst [vmem:[#allocation8 + $0x440] sm:$0xff] %v1312
    %1473 = vst [vmem:[#allocation8 + $0x448] sm:$0xff] %v1313
    %1474 = vst [vmem:[#allocation8 + $0x450] sm:$0xff] %v1314
    %1475 = vst [vmem:[#allocation8 + $0x458] sm:$0xff] %v1315
    %1476 = vst [vmem:[#allocation8 + $0x460] sm:$0xff] %v1316
    %1477 = vst [vmem:[#allocation8 + $0x468] sm:$0xff] %v1317
    %1478 = vst [vmem:[#allocation8 + $0x470] sm:$0xff] %v1318
    %1479 = vst [vmem:[#allocation8 + $0x478] sm:$0xff] %v1319
    %1480 = vst [vmem:[#allocation8 + $0x480] sm:$0xff] %v1320
    %1481 = vst [vmem:[#allocation8 + $0x488] sm:$0xff] %v1321
    %1482 = vst [vmem:[#allocation8 + $0x490] sm:$0xff] %v1322
    %1483 = vst [vmem:[#allocation8 + $0x498] sm:$0xff] %v1323
    %1484 = vst [vmem:[#allocation8 + $0x4a0] sm:$0xff] %v1324
    %1485 = vst [vmem:[#allocation8 + $0x4a8] sm:$0xff] %v1325
    %1486 = vst [vmem:[#allocation8 + $0x4b0] sm:$0xff] %v1326
    %1487 = vst [vmem:[#allocation8 + $0x4b8] sm:$0xff] %v1327
    %1488 = vst [vmem:[#allocation8 + $0x4c0] sm:$0xff] %v1328
    %1489 = vst [vmem:[#allocation8 + $0x4c8] sm:$0xff] %v1329
    %1490 = vst [vmem:[#allocation8 + $0x4d0] sm:$0xff] %v1330
    %1491 = vst [vmem:[#allocation8 + $0x4d8] sm:$0xff] %v1331
    %1492 = vst [vmem:[#allocation8 + $0x4e0] sm:$0xff] %v1332
    %1493 = vst [vmem:[#allocation8 + $0x4e8] sm:$0xff] %v1333
    %1494 = vst [vmem:[#allocation8 + $0x4f0] sm:$0xff] %v1334
    %1495 = vst [vmem:[#allocation8 + $0x4f8] sm:$0xff] %v1335
    // Predicated region
    $region26: #{tpu_custom_call.1} parent=1 // pred_check
      _
    $region27: #{tpu_custom_call.1} parent=1 // pred_check_branch
      %1497 = sbr.rel (0) target = $region29
    $region28: #{tpu_custom_call.1} parent=1 // pred_region
      %s1499 = ssub.s32 20480, 20480
      %1500 = vsyncadd [#allocation4], %s1499
      %s1501 = sshll.u32 [#allocation8], 4
      %s1502 = int_to_ptr.vmem [resolvable:$true] %s1501
      %1507 = dma.vmem_to_hbm [thread:$0]  %s1502, 20480, %s3, [#allocation4], 128, 128, 8
    $region29: #{tpu_custom_call.1} parent=1 // pred_fallthru
      _
    // Predicated region
    $region30: #{tpu_custom_call.1} parent=1 // pred_check
      _
    $region31: #{tpu_custom_call.1} parent=1 // pred_check_branch
      %1509 = sbr.rel (0) target = $region33
    $region32: #{tpu_custom_call.1} parent=1 // pred_region
      %1510 = dma.done [#allocation4], 20480
    $region33: #{tpu_custom_call.1} parent=1 // pred_fallthru
      _
    %1511 = vsyncpa [#allocation3], 1
    %1512 = vsyncpa [#allocation6], 1
    %1513 = vsyncpa [#allocation4], 1

</llo_original>
